<compile_context>
chip_gen: v7x
topology: tpu7x:2x2x1
jax: 0.10.0
libtpu: 0.0.40
codegen_flags: <defaults>
</compile_context>

<pallas_src>
import jax
import jax.numpy as jnp
from jax.experimental import pallas as pl
from jax.experimental.pallas import tpu as pltpu


# ----------------------------------------------------------------------------
# exact-GELU helper usable inside the kernel (erf via Abramowitz-Stegun 7.1.26,
# max abs error ~1.5e-7 -- avoids relying on an erf primitive lowering).
# ----------------------------------------------------------------------------
def _erf_poly(v):
    p = 0.3275911
    a1, a2, a3, a4, a5 = (0.254829592, -0.284496736, 1.421413741,
                          -1.453152027, 1.061405429)
    s = jnp.where(v >= 0.0, 1.0, -1.0)
    va = v * s
    t = 1.0 / (1.0 + p * va)
    poly = t * (a1 + t * (a2 + t * (a3 + t * (a4 + t * a5))))
    return s * (1.0 - poly * jnp.exp(-(va * va)))


def _gelu(v):
    return 0.5 * v * (1.0 + _erf_poly(v * 0.7071067811865476))


# ----------------------------------------------------------------------------
# Pallas kernel: one grid step = TB batch elements, whole ACAF forward fused.
#
#   xh  : (2, TB, H, W*C)  x1/x2 in 'b h (w c)' layout (bf16)
#   xw  : (2, TB, W, H*C)  x1/x2 in 'b w (h c)' layout (bf16)
#   wsq : (4, WC, WC) bf16 [kron(I_W,w1^T), kron(I_W,w2^T),
#                           kron(I_W,A_fold^T), tile(B_fold^T)]
#   hsq : (2, HC, HC) bf16 [kron(I_H,w1^T), kron(I_H,w2^T)]
#   eexp: (WC, W)     bf16 kron(I_W, ones(C,1)) expansion matrix
#   bw  : (3, 1, WC)  f32  [b1 tiled, b2 tiled, fused bias]
#   bh  : (2, 1, HC)  f32  [b1 tiled, b2 tiled]
# ----------------------------------------------------------------------------
def acaf_kernel(xh_ref, xw_ref, wsq_ref, hsq_ref, eexp_ref, bw_ref, bh_ref,
                out_ref):
    _, TB, H, WC = xh_ref.shape
    _, _, W, HC = xw_ref.shape
    f32, bf16 = jnp.float32, jnp.bfloat16

    def mm(a, b):                         # (M,K)@(K,N), bf16 operands, f32 acc
        return jax.lax.dot_general(a.astype(bf16), b.astype(bf16),
                                   (((1,), (0,)), ((), ())),
                                   preferred_element_type=f32)

    def bmm(a, b):                        # (B,M,K)@(B,K,N)
        return jax.lax.dot_general(a.astype(bf16), b.astype(bf16),
                                   (((2,), (1,)), ((0,), (0,))),
                                   preferred_element_type=f32)

    def bmm_nt(a, b):                     # (B,M,K)@(B,N,K)^T
        return jax.lax.dot_general(a.astype(bf16), b.astype(bf16),
                                   (((2,), (2,)), ((0,), (0,))),
                                   preferred_element_type=f32)

    def l2n(t):                           # F.normalize(dim=-1)
        ss = jnp.sum(t * t, axis=-1, keepdims=True)
        return t * jax.lax.rsqrt(jnp.maximum(ss, 1e-24))

    def softmax(t):
        m = jnp.max(t, axis=-1, keepdims=True)
        p = jnp.exp(t - m)
        return p * pl.reciprocal(jnp.sum(p, axis=-1, keepdims=True),
                                 approx=True)

    # -------- project_out1 / project_out2 (1x1 convs) as stacked MXU matmuls
    x1h = xh_ref[0].reshape(TB * H, WC)   # x1 in 'b h (w c)'
    x2h = xh_ref[1].reshape(TB * H, WC)
    x1w = xw_ref[0].reshape(TB * W, HC)   # x1 in 'b w (h c)'
    x2w = xw_ref[1].reshape(TB * W, HC)

    o1h = mm(x1h, wsq_ref[0]) + bw_ref[0]          # out1, 'h (w c)'  (TB*H, WC)
    o2h = mm(x2h, wsq_ref[1]) + bw_ref[1]          # out2, 'h (w c)'
    o1w = mm(x1w, hsq_ref[0]) + bh_ref[0]          # out1, 'w (h c)'  (TB*W, HC)
    o2w = mm(x2w, hsq_ref[1]) + bh_ref[1]          # out2, 'w (h c)'

    o1h3 = o1h.reshape(TB, H, WC)
    o2h3 = o2h.reshape(TB, H, WC)

    # -------- branch 1: row attention (q1 from out2, k1/v1 from out1)
    attn1 = softmax(bmm_nt(l2n(o2h).reshape(TB, H, WC),
                           l2n(o1h).reshape(TB, H, WC)))    # (TB, H, H)
    out3 = bmm(attn1, o1h3)                                 # (TB, H, WC)

    # -------- branch 2: column attention (q2 from out1, k2/v2 from out2)
    attn2 = softmax(bmm_nt(l2n(o1w).reshape(TB, W, HC),
                           l2n(o2w).reshape(TB, W, HC)))    # (TB, W, W)
    # Expand attn2 to big[b,(w,c),(v,d)] = attn2[b,v,w] with two tiny MXU
    # matmuls (no in-kernel transpose), then fold project_out4 + c1-second-
    # half + BN (btile) into it.
    eexp = jnp.broadcast_to(eexp_ref[...], (TB, WC, W))
    step1 = bmm_nt(eexp, attn2)                             # (TB, WC, W)
    big = bmm_nt(step1, eexp)                               # (TB, WC, WC)
    m2b = big * wsq_ref[3].astype(f32)                      # kron(attn2^T, B_fold^T)
    contrib2 = bmm(o2h3, m2b)                               # (TB, H, WC)

    # -------- combine: A_fold on out3 + branch-2 contribution + bias, GELU
    pre = (mm(out3.reshape(TB * H, WC), wsq_ref[2])
           + contrib2.reshape(TB * H, WC) + bw_ref[2])
    out_ref[...] = _gelu(pre).reshape(TB, H, WC)


# ----------------------------------------------------------------------------
# Parameter setup
# ----------------------------------------------------------------------------
def init_params(key, dim):
    ks = iter(jax.random.split(key, 16))

    def nrm(shape, s=0.25):
        return s * jax.random.normal(next(ks), shape, dtype=jnp.float32)

    return dict(
        w1=nrm((dim, dim)), b1=nrm((dim,), 0.1),
        w2=nrm((dim, dim)), b2=nrm((dim,), 0.1),
        w3=nrm((dim, dim)), b3=nrm((dim,), 0.1),
        w4=nrm((dim, dim)), b4=nrm((dim,), 0.1),
        wc=nrm((dim, 2 * dim)), bc=nrm((dim,), 0.1),
        bn_gamma=jax.random.uniform(next(ks), (dim,), jnp.float32, 0.5, 1.5),
        bn_beta=nrm((dim,), 0.1),
        bn_mean=nrm((dim,), 0.1),
        bn_var=jax.random.uniform(next(ks), (dim,), jnp.float32, 0.5, 1.5),
    )


# ----------------------------------------------------------------------------
# Wrapper: layout plumbing + weight folding + pallas_call
# ----------------------------------------------------------------------------
def acaf_pallas(x1, x2, params, eps_bn=1e-5, batch_block=None):
    B, C, H, W = x1.shape
    WC, HC = W * C, H * C
    f32, bf16 = jnp.float32, jnp.bfloat16
    tb = min(B, 8) if batch_block is None else batch_block
    assert B % tb == 0, "batch must be divisible by the batch block"

    # layouts: 'b c h w -> b h (w c)' and 'b c h w -> b w (h c)'  (free XLA work)
    def to_hw(t):
        return jnp.transpose(t, (0, 2, 3, 1)).reshape(B, H, WC)

    def to_wh(t):
        return jnp.transpose(t, (0, 3, 2, 1)).reshape(B, W, HC)

    xh = jnp.stack([to_hw(x1), to_hw(x2)]).astype(bf16)      # (2, B, H, WC)
    xw = jnp.stack([to_wh(x1), to_wh(x2)]).astype(bf16)      # (2, B, W, HC)

    # fold project_out3/4 + c1 (1x1 conv) + eval-mode BatchNorm
    s = params["bn_gamma"] / jnp.sqrt(params["bn_var"] + eps_bn)
    wc_a, wc_b = params["wc"][:, :C], params["wc"][:, C:]
    a_fold = (wc_a @ params["w3"]) * s[:, None]
    b_fold = (wc_b @ params["w4"]) * s[:, None]
    bias_f = (s * (wc_a @ params["b3"] + wc_b @ params["b4"] + params["bc"]
                   - params["bn_mean"]) + params["bn_beta"])

    eye_w = jnp.eye(W, dtype=f32)
    eye_h = jnp.eye(H, dtype=f32)
    wsq = jnp.stack([jnp.kron(eye_w, params["w1"].T),          # (4, WC, WC)
                     jnp.kron(eye_w, params["w2"].T),
                     jnp.kron(eye_w, a_fold.T),
                     jnp.tile(b_fold.T, (W, W))]).astype(bf16)
    hsq = jnp.stack([jnp.kron(eye_h, params["w1"].T),          # (2, HC, HC)
                     jnp.kron(eye_h, params["w2"].T)]).astype(bf16)
    eexp = jnp.kron(eye_w, jnp.ones((C, 1), f32)).astype(bf16)  # (WC, W)

    bw = jnp.stack([jnp.tile(params["b1"], W),                  # (3, 1, WC) f32
                    jnp.tile(params["b2"], W),
                    jnp.tile(bias_f, W)]).reshape(3, 1, WC).astype(f32)
    bh = jnp.stack([jnp.tile(params["b1"], H),                  # (2, 1, HC) f32
                    jnp.tile(params["b2"], H)]).reshape(2, 1, HC).astype(f32)

    def act_spec(rows, cols):
        return pl.BlockSpec((2, tb, rows, cols), lambda b: (0, b, 0, 0))

    def const_spec(shape):
        return pl.BlockSpec(shape, lambda b: (0,) * len(shape))

    e_hw = pl.pallas_call(
        acaf_kernel,
        out_shape=jax.ShapeDtypeStruct((B, H, WC), f32),
        grid=(B // tb,),
        in_specs=[
            act_spec(H, WC), act_spec(W, HC),       # xh, xw
            const_spec((4, WC, WC)),                # wsq
            const_spec((2, HC, HC)),                # hsq
            const_spec((WC, W)),                    # eexp
            const_spec((3, 1, WC)),                 # bw
            const_spec((2, 1, HC)),                 # bh
        ],
        out_specs=pl.BlockSpec((tb, H, WC), lambda b: (b, 0, 0)),
        compiler_params=pltpu.CompilerParams(
            dimension_semantics=("parallel",)),
        # TODO(synk): set vmem_limit_bytes here once WC/HC grow large enough
        # that the bf16 constant slabs approach the default scoped VMEM limit.
    )(xh, xw, wsq, hsq, eexp, bw, bh)

    # 'b h (w c) -> b c h w'
    return jnp.transpose(e_hw.reshape(B, H, W, C), (0, 3, 1, 2))


# ----------------------------------------------------------------------------
# Pure-JAX reference (independent, mirrors the PyTorch forward; returns `e`)
# ----------------------------------------------------------------------------
def acaf_reference(x1, x2, p, eps_bn=1e-5):
    B, C, H, W = x1.shape
    hp = jax.lax.Precision.HIGHEST

    def conv1x1(x, w, b):
        return jnp.einsum("oc,bchw->bohw", w, x, precision=hp) + b.reshape(1, -1, 1, 1)

    out1 = conv1x1(x1, p["w1"], p["b1"])
    out2 = conv1x1(x2, p["w2"], p["b2"])

    to_hw = lambda t: jnp.transpose(t, (0, 2, 3, 1)).reshape(B, H, W * C)
    to_wh = lambda t: jnp.transpose(t, (0, 3, 2, 1)).reshape(B, W, H * C)
    k1, v1, q1 = to_hw(out1), to_hw(out1), to_hw(out2)
    k2, v2, q2 = to_wh(out2), to_wh(out2), to_wh(out1)

    l2n = lambda t: t / jnp.maximum(
        jnp.sqrt(jnp.sum(t * t, axis=-1, keepdims=True)), 1e-12)
    q1, q2, k1, k2 = l2n(q1), l2n(q2), l2n(k1), l2n(k2)

    attn1 = jax.nn.softmax(jnp.einsum("bhd,bgd->bhg", q1, k1, precision=hp), axis=-1)
    out3 = jnp.einsum("bhg,bgd->bhd", attn1, v1, precision=hp)
    attn2 = jax.nn.softmax(jnp.einsum("bwd,bvd->bwv", q2, k2, precision=hp), axis=-1)
    out4 = jnp.einsum("bwv,bvd->bwd", attn2, v2, precision=hp)

    out3 = jnp.transpose(out3.reshape(B, H, W, C), (0, 3, 1, 2))   # b c h w
    out4 = jnp.transpose(out4.reshape(B, W, H, C), (0, 3, 2, 1))   # b c h w

    e1 = conv1x1(out3, p["w3"], p["b3"])
    e2 = conv1x1(out4, p["w4"], p["b4"])
    e = conv1x1(jnp.concatenate([e1, e2], axis=1), p["wc"], p["bc"])
    s = p["bn_gamma"] / jnp.sqrt(p["bn_var"] + eps_bn)
    e = e * s.reshape(1, -1, 1, 1) + (p["bn_beta"] - p["bn_mean"] * s).reshape(1, -1, 1, 1)
    e = jax.nn.gelu(e, approximate=False)
    # (pooling / Conv1d / Mix / sigmoid branch intentionally skipped: forward returns `e`)
    return e


if __name__ == "__main__":
    B, C, H, W = 2, 4, 16, 16
    key = jax.random.PRNGKey(0)
    kx1, kx2, kp = jax.random.split(key, 3)
    x1 = jax.random.normal(kx1, (B, C, H, W), dtype=jnp.float32)
    x2 = jax.random.normal(kx2, (B, C, H, W), dtype=jnp.float32)
    params = init_params(kp, C)

    out = jax.jit(lambda a, b: acaf_pallas(a, b, params))(x1, x2)
    out = jax.block_until_ready(out)
    assert out.shape == (B, C, H, W), out.shape

    ref = acaf_reference(x1, x2, params)
    max_err = float(jnp.max(jnp.abs(out - ref)))
    # bf16 MXU operands with f32 accumulation: a few e-3 absolute deviation
    # from the f32 reference is expected; genuine bugs show up as O(0.1-1).
    if not (max_err < 5e-2):
        raise SystemExit(f"mismatch vs reference: max abs err = {max_err}")
    print("KERNEL_OK")
</pallas_src>

<mosaic_0001>
module attributes {stable_mosaic.version = 11 : i64} {
  func.func @acaf_kernel(%arg0: i32, %arg1: memref<2x2x16x64xbf16, #tpu.memory_space<vmem>>, %arg2: memref<2x2x16x64xbf16, #tpu.memory_space<vmem>>, %arg3: memref<4x64x64xbf16, #tpu.memory_space<vmem>>, %arg4: memref<2x64x64xbf16, #tpu.memory_space<vmem>>, %arg5: memref<64x16xbf16, #tpu.memory_space<vmem>>, %arg6: memref<3x1x64xf32, #tpu.memory_space<vmem>>, %arg7: memref<2x1x64xf32, #tpu.memory_space<vmem>>, %arg8: memref<2x16x64xf32, #tpu.memory_space<vmem>>) attributes {dimension_semantics = [#tpu.dimension_semantics<parallel>], iteration_bounds = array<i64: 1>, scalar_prefetch = 0 : i64, scratch_operands = 0 : i64, tpu.core_type = #tpu.core_type<tc>, window_params = [{transform_indices = @transform_0, window_bounds = array<i64: 2, 2, 16, 64>}, {transform_indices = @transform_1, window_bounds = array<i64: 2, 2, 16, 64>}, {pipeline_mode = #tpu.pipeline_mode<synchronous>, transform_indices = @transform_2, window_bounds = array<i64: 4, 64, 64>}, {pipeline_mode = #tpu.pipeline_mode<synchronous>, transform_indices = @transform_3, window_bounds = array<i64: 2, 64, 64>}, {pipeline_mode = #tpu.pipeline_mode<synchronous>, transform_indices = @transform_4, window_bounds = array<i64: 64, 16>}, {pipeline_mode = #tpu.pipeline_mode<synchronous>, transform_indices = @transform_5, window_bounds = array<i64: 3, 1, 64>}, {pipeline_mode = #tpu.pipeline_mode<synchronous>, transform_indices = @transform_6, window_bounds = array<i64: 2, 1, 64>}, {transform_indices = @transform_7, window_bounds = array<i64: 2, 16, 64>}]} {
    %c0 = arith.constant 0 : index
    %c0_0 = arith.constant 0 : index
    %c0_1 = arith.constant 0 : index
    %c0_2 = arith.constant 0 : index
    %0 = vector.load %arg1[%c0, %c0_0, %c0_1, %c0_2] : memref<2x2x16x64xbf16, #tpu.memory_space<vmem>>, vector<1x2x16x64xbf16>
    %1 = vector.shape_cast %0 : vector<1x2x16x64xbf16> to vector<2x16x64xbf16>
    %2 = vector.shape_cast %1 : vector<2x16x64xbf16> to vector<32x64xbf16>
    %c1 = arith.constant 1 : index
    %c0_3 = arith.constant 0 : index
    %c0_4 = arith.constant 0 : index
    %c0_5 = arith.constant 0 : index
    %3 = vector.load %arg1[%c1, %c0_3, %c0_4, %c0_5] : memref<2x2x16x64xbf16, #tpu.memory_space<vmem>>, vector<1x2x16x64xbf16>
    %4 = vector.shape_cast %3 : vector<1x2x16x64xbf16> to vector<2x16x64xbf16>
    %5 = vector.shape_cast %4 : vector<2x16x64xbf16> to vector<32x64xbf16>
    %c0_6 = arith.constant 0 : index
    %c0_7 = arith.constant 0 : index
    %c0_8 = arith.constant 0 : index
    %c0_9 = arith.constant 0 : index
    %6 = vector.load %arg2[%c0_6, %c0_7, %c0_8, %c0_9] : memref<2x2x16x64xbf16, #tpu.memory_space<vmem>>, vector<1x2x16x64xbf16>
    %7 = vector.shape_cast %6 : vector<1x2x16x64xbf16> to vector<2x16x64xbf16>
    %8 = vector.shape_cast %7 : vector<2x16x64xbf16> to vector<32x64xbf16>
    %c1_10 = arith.constant 1 : index
    %c0_11 = arith.constant 0 : index
    %c0_12 = arith.constant 0 : index
    %c0_13 = arith.constant 0 : index
    %9 = vector.load %arg2[%c1_10, %c0_11, %c0_12, %c0_13] : memref<2x2x16x64xbf16, #tpu.memory_space<vmem>>, vector<1x2x16x64xbf16>
    %10 = vector.shape_cast %9 : vector<1x2x16x64xbf16> to vector<2x16x64xbf16>
    %11 = vector.shape_cast %10 : vector<2x16x64xbf16> to vector<32x64xbf16>
    %c0_14 = arith.constant 0 : index
    %c0_15 = arith.constant 0 : index
    %c0_16 = arith.constant 0 : index
    %12 = vector.load %arg3[%c0_14, %c0_15, %c0_16] : memref<4x64x64xbf16, #tpu.memory_space<vmem>>, vector<1x64x64xbf16>
    %13 = vector.shape_cast %12 : vector<1x64x64xbf16> to vector<64x64xbf16>
    %cst = arith.constant dense<0.000000e+00> : vector<32x64xf32>
    %14 = tpu.matmul %2, %13, %cst {dimension_numbers = #tpu.dot_dimension_numbers<[1], [0], [0], [1], [0, 0, 1, 1], [], []>} : vector<32x64xbf16>, vector<64x64xbf16>, vector<32x64xf32> -> vector<32x64xf32>
    %c0_17 = arith.constant 0 : index
    %c0_18 = arith.constant 0 : index
    %c0_19 = arith.constant 0 : index
    %15 = vector.load %arg6[%c0_17, %c0_18, %c0_19] : memref<3x1x64xf32, #tpu.memory_space<vmem>>, vector<1x1x64xf32>
    %16 = vector.shape_cast %15 : vector<1x1x64xf32> to vector<1x64xf32>
    %17 = vector.broadcast %16 : vector<1x64xf32> to vector<32x64xf32>
    %18 = arith.addf %14, %17 : vector<32x64xf32>
    %c1_20 = arith.constant 1 : index
    %c0_21 = arith.constant 0 : index
    %c0_22 = arith.constant 0 : index
    %19 = vector.load %arg3[%c1_20, %c0_21, %c0_22] : memref<4x64x64xbf16, #tpu.memory_space<vmem>>, vector<1x64x64xbf16>
    %20 = vector.shape_cast %19 : vector<1x64x64xbf16> to vector<64x64xbf16>
    %cst_23 = arith.constant dense<0.000000e+00> : vector<32x64xf32>
    %21 = tpu.matmul %5, %20, %cst_23 {dimension_numbers = #tpu.dot_dimension_numbers<[1], [0], [0], [1], [0, 0, 1, 1], [], []>} : vector<32x64xbf16>, vector<64x64xbf16>, vector<32x64xf32> -> vector<32x64xf32>
    %c1_24 = arith.constant 1 : index
    %c0_25 = arith.constant 0 : index
    %c0_26 = arith.constant 0 : index
    %22 = vector.load %arg6[%c1_24, %c0_25, %c0_26] : memref<3x1x64xf32, #tpu.memory_space<vmem>>, vector<1x1x64xf32>
    %23 = vector.shape_cast %22 : vector<1x1x64xf32> to vector<1x64xf32>
    %24 = vector.broadcast %23 : vector<1x64xf32> to vector<32x64xf32>
    %25 = arith.addf %21, %24 : vector<32x64xf32>
    %c0_27 = arith.constant 0 : index
    %c0_28 = arith.constant 0 : index
    %c0_29 = arith.constant 0 : index
    %26 = vector.load %arg4[%c0_27, %c0_28, %c0_29] : memref<2x64x64xbf16, #tpu.memory_space<vmem>>, vector<1x64x64xbf16>
    %27 = vector.shape_cast %26 : vector<1x64x64xbf16> to vector<64x64xbf16>
    %cst_30 = arith.constant dense<0.000000e+00> : vector<32x64xf32>
    %28 = tpu.matmul %8, %27, %cst_30 {dimension_numbers = #tpu.dot_dimension_numbers<[1], [0], [0], [1], [0, 0, 1, 1], [], []>} : vector<32x64xbf16>, vector<64x64xbf16>, vector<32x64xf32> -> vector<32x64xf32>
    %c0_31 = arith.constant 0 : index
    %c0_32 = arith.constant 0 : index
    %c0_33 = arith.constant 0 : index
    %29 = vector.load %arg7[%c0_31, %c0_32, %c0_33] : memref<2x1x64xf32, #tpu.memory_space<vmem>>, vector<1x1x64xf32>
    %30 = vector.shape_cast %29 : vector<1x1x64xf32> to vector<1x64xf32>
    %31 = vector.broadcast %30 : vector<1x64xf32> to vector<32x64xf32>
    %32 = arith.addf %28, %31 : vector<32x64xf32>
    %c1_34 = arith.constant 1 : index
    %c0_35 = arith.constant 0 : index
    %c0_36 = arith.constant 0 : index
    %33 = vector.load %arg4[%c1_34, %c0_35, %c0_36] : memref<2x64x64xbf16, #tpu.memory_space<vmem>>, vector<1x64x64xbf16>
    %34 = vector.shape_cast %33 : vector<1x64x64xbf16> to vector<64x64xbf16>
    %cst_37 = arith.constant dense<0.000000e+00> : vector<32x64xf32>
    %35 = tpu.matmul %11, %34, %cst_37 {dimension_numbers = #tpu.dot_dimension_numbers<[1], [0], [0], [1], [0, 0, 1, 1], [], []>} : vector<32x64xbf16>, vector<64x64xbf16>, vector<32x64xf32> -> vector<32x64xf32>
    %c1_38 = arith.constant 1 : index
    %c0_39 = arith.constant 0 : index
    %c0_40 = arith.constant 0 : index
    %36 = vector.load %arg7[%c1_38, %c0_39, %c0_40] : memref<2x1x64xf32, #tpu.memory_space<vmem>>, vector<1x1x64xf32>
    %37 = vector.shape_cast %36 : vector<1x1x64xf32> to vector<1x64xf32>
    %38 = vector.broadcast %37 : vector<1x64xf32> to vector<32x64xf32>
    %39 = arith.addf %35, %38 : vector<32x64xf32>
    %40 = vector.shape_cast %18 : vector<32x64xf32> to vector<2x16x64xf32>
    %41 = vector.shape_cast %25 : vector<32x64xf32> to vector<2x16x64xf32>
    %42 = arith.mulf %25, %25 : vector<32x64xf32>
    %cst_41 = arith.constant dense<0.000000e+00> : vector<32xf32>
    %43 = vector.multi_reduction <add>, %42, %cst_41 [1] : vector<32x64xf32> to vector<32xf32>
    %44 = vector.shape_cast %43 : vector<32xf32> to vector<32x1xf32>
    %cst_42 = arith.constant 1.000000e-24 : f32
    %45 = vector.broadcast %cst_42 : f32 to vector<32x1xf32>
    %46 = arith.maximumf %44, %45 : vector<32x1xf32>
    %47 = math.rsqrt %46 : vector<32x1xf32>
    %48 = vector.broadcast %47 : vector<32x1xf32> to vector<32x64xf32>
    %49 = arith.mulf %25, %48 : vector<32x64xf32>
    %50 = vector.shape_cast %49 : vector<32x64xf32> to vector<2x16x64xf32>
    %51 = arith.mulf %18, %18 : vector<32x64xf32>
    %cst_43 = arith.constant dense<0.000000e+00> : vector<32xf32>
    %52 = vector.multi_reduction <add>, %51, %cst_43 [1] : vector<32x64xf32> to vector<32xf32>
    %53 = vector.shape_cast %52 : vector<32xf32> to vector<32x1xf32>
    %cst_44 = arith.constant 1.000000e-24 : f32
    %54 = vector.broadcast %cst_44 : f32 to vector<32x1xf32>
    %55 = arith.maximumf %53, %54 : vector<32x1xf32>
    %56 = math.rsqrt %55 : vector<32x1xf32>
    %57 = vector.broadcast %56 : vector<32x1xf32> to vector<32x64xf32>
    %58 = arith.mulf %18, %57 : vector<32x64xf32>
    %59 = vector.shape_cast %58 : vector<32x64xf32> to vector<2x16x64xf32>
    %60 = arith.truncf %50 : vector<2x16x64xf32> to vector<2x16x64xbf16>
    %61 = arith.truncf %59 : vector<2x16x64xf32> to vector<2x16x64xbf16>
    %cst_45 = arith.constant dense<0.000000e+00> : vector<2x16x16xf32>
    %62 = tpu.matmul %60, %61, %cst_45 {dimension_numbers = #tpu.dot_dimension_numbers<[2], [2], [1], [1], [0, 0, 0, 1, 1, 1], [0], [0]>} : vector<2x16x64xbf16>, vector<2x16x64xbf16>, vector<2x16x16xf32> -> vector<2x16x16xf32>
    %cst_46 = arith.constant dense<0xFF800000> : vector<2x16xf32>
    %63 = vector.multi_reduction <maximumf>, %62, %cst_46 [2] : vector<2x16x16xf32> to vector<2x16xf32>
    %64 = vector.shape_cast %63 : vector<2x16xf32> to vector<2x16x1xf32>
    %65 = vector.broadcast %64 : vector<2x16x1xf32> to vector<2x16x16xf32>
    %66 = arith.subf %62, %65 : vector<2x16x16xf32>
    %67 = math.exp %66 : vector<2x16x16xf32>
    %cst_47 = arith.constant dense<0.000000e+00> : vector<2x16xf32>
    %68 = vector.multi_reduction <add>, %67, %cst_47 [2] : vector<2x16x16xf32> to vector<2x16xf32>
    %69 = vector.shape_cast %68 : vector<2x16xf32> to vector<2x16x1xf32>
    %70 = tpu.reciprocal %69 {approx = true} : vector<2x16x1xf32> -> vector<2x16x1xf32>
    %71 = vector.broadcast %70 : vector<2x16x1xf32> to vector<2x16x16xf32>
    %72 = arith.mulf %67, %71 : vector<2x16x16xf32>
    %73 = arith.truncf %72 : vector<2x16x16xf32> to vector<2x16x16xbf16>
    %74 = arith.truncf %40 : vector<2x16x64xf32> to vector<2x16x64xbf16>
    %cst_48 = arith.constant dense<0.000000e+00> : vector<2x16x64xf32>
    %75 = tpu.matmul %73, %74, %cst_48 {dimension_numbers = #tpu.dot_dimension_numbers<[2], [1], [1], [2], [0, 0, 0, 1, 1, 2], [0], [0]>} : vector<2x16x16xbf16>, vector<2x16x64xbf16>, vector<2x16x64xf32> -> vector<2x16x64xf32>
    %76 = arith.mulf %32, %32 : vector<32x64xf32>
    %cst_49 = arith.constant dense<0.000000e+00> : vector<32xf32>
    %77 = vector.multi_reduction <add>, %76, %cst_49 [1] : vector<32x64xf32> to vector<32xf32>
    %78 = vector.shape_cast %77 : vector<32xf32> to vector<32x1xf32>
    %cst_50 = arith.constant 1.000000e-24 : f32
    %79 = vector.broadcast %cst_50 : f32 to vector<32x1xf32>
    %80 = arith.maximumf %78, %79 : vector<32x1xf32>
    %81 = math.rsqrt %80 : vector<32x1xf32>
    %82 = vector.broadcast %81 : vector<32x1xf32> to vector<32x64xf32>
    %83 = arith.mulf %32, %82 : vector<32x64xf32>
    %84 = vector.shape_cast %83 : vector<32x64xf32> to vector<2x16x64xf32>
    %85 = arith.mulf %39, %39 : vector<32x64xf32>
    %cst_51 = arith.constant dense<0.000000e+00> : vector<32xf32>
    %86 = vector.multi_reduction <add>, %85, %cst_51 [1] : vector<32x64xf32> to vector<32xf32>
    %87 = vector.shape_cast %86 : vector<32xf32> to vector<32x1xf32>
    %cst_52 = arith.constant 1.000000e-24 : f32
    %88 = vector.broadcast %cst_52 : f32 to vector<32x1xf32>
    %89 = arith.maximumf %87, %88 : vector<32x1xf32>
    %90 = math.rsqrt %89 : vector<32x1xf32>
    %91 = vector.broadcast %90 : vector<32x1xf32> to vector<32x64xf32>
    %92 = arith.mulf %39, %91 : vector<32x64xf32>
    %93 = vector.shape_cast %92 : vector<32x64xf32> to vector<2x16x64xf32>
    %94 = arith.truncf %84 : vector<2x16x64xf32> to vector<2x16x64xbf16>
    %95 = arith.truncf %93 : vector<2x16x64xf32> to vector<2x16x64xbf16>
    %cst_53 = arith.constant dense<0.000000e+00> : vector<2x16x16xf32>
    %96 = tpu.matmul %94, %95, %cst_53 {dimension_numbers = #tpu.dot_dimension_numbers<[2], [2], [1], [1], [0, 0, 0, 1, 1, 1], [0], [0]>} : vector<2x16x64xbf16>, vector<2x16x64xbf16>, vector<2x16x16xf32> -> vector<2x16x16xf32>
    %cst_54 = arith.constant dense<0xFF800000> : vector<2x16xf32>
    %97 = vector.multi_reduction <maximumf>, %96, %cst_54 [2] : vector<2x16x16xf32> to vector<2x16xf32>
    %98 = vector.shape_cast %97 : vector<2x16xf32> to vector<2x16x1xf32>
    %99 = vector.broadcast %98 : vector<2x16x1xf32> to vector<2x16x16xf32>
    %100 = arith.subf %96, %99 : vector<2x16x16xf32>
    %101 = math.exp %100 : vector<2x16x16xf32>
    %cst_55 = arith.constant dense<0.000000e+00> : vector<2x16xf32>
    %102 = vector.multi_reduction <add>, %101, %cst_55 [2] : vector<2x16x16xf32> to vector<2x16xf32>
    %103 = vector.shape_cast %102 : vector<2x16xf32> to vector<2x16x1xf32>
    %104 = tpu.reciprocal %103 {approx = true} : vector<2x16x1xf32> -> vector<2x16x1xf32>
    %105 = vector.broadcast %104 : vector<2x16x1xf32> to vector<2x16x16xf32>
    %106 = arith.mulf %101, %105 : vector<2x16x16xf32>
    %c0_56 = arith.constant 0 : index
    %c0_57 = arith.constant 0 : index
    %107 = vector.load %arg5[%c0_56, %c0_57] : memref<64x16xbf16, #tpu.memory_space<vmem>>, vector<64x16xbf16>
    %108 = vector.shape_cast %107 : vector<64x16xbf16> to vector<1x64x16xbf16>
    %109 = vector.broadcast %108 : vector<1x64x16xbf16> to vector<2x64x16xbf16>
    %110 = arith.truncf %106 : vector<2x16x16xf32> to vector<2x16x16xbf16>
    %cst_58 = arith.constant dense<0.000000e+00> : vector<2x64x16xf32>
    %111 = tpu.matmul %109, %110, %cst_58 {dimension_numbers = #tpu.dot_dimension_numbers<[2], [2], [1], [1], [0, 0, 0, 1, 1, 1], [0], [0]>} : vector<2x64x16xbf16>, vector<2x16x16xbf16>, vector<2x64x16xf32> -> vector<2x64x16xf32>
    %112 = arith.truncf %111 : vector<2x64x16xf32> to vector<2x64x16xbf16>
    %cst_59 = arith.constant dense<0.000000e+00> : vector<2x64x64xf32>
    %113 = tpu.matmul %112, %109, %cst_59 {dimension_numbers = #tpu.dot_dimension_numbers<[2], [2], [1], [1], [0, 0, 0, 1, 1, 1], [0], [0]>} : vector<2x64x16xbf16>, vector<2x64x16xbf16>, vector<2x64x64xf32> -> vector<2x64x64xf32>
    %c3 = arith.constant 3 : index
    %c0_60 = arith.constant 0 : index
    %c0_61 = arith.constant 0 : index
    %114 = vector.load %arg3[%c3, %c0_60, %c0_61] : memref<4x64x64xbf16, #tpu.memory_space<vmem>>, vector<1x64x64xbf16>
    %115 = vector.shape_cast %114 : vector<1x64x64xbf16> to vector<64x64xbf16>
    %116 = arith.extf %115 : vector<64x64xbf16> to vector<64x64xf32>
    %117 = vector.shape_cast %116 : vector<64x64xf32> to vector<1x64x64xf32>
    %118 = vector.broadcast %117 : vector<1x64x64xf32> to vector<2x64x64xf32>
    %119 = arith.mulf %113, %118 : vector<2x64x64xf32>
    %120 = arith.truncf %41 : vector<2x16x64xf32> to vector<2x16x64xbf16>
    %121 = arith.truncf %119 : vector<2x64x64xf32> to vector<2x64x64xbf16>
    %cst_62 = arith.constant dense<0.000000e+00> : vector<2x16x64xf32>
    %122 = tpu.matmul %120, %121, %cst_62 {dimension_numbers = #tpu.dot_dimension_numbers<[2], [1], [1], [2], [0, 0, 0, 1, 1, 2], [0], [0]>} : vector<2x16x64xbf16>, vector<2x64x64xbf16>, vector<2x16x64xf32> -> vector<2x16x64xf32>
    %123 = vector.shape_cast %75 : vector<2x16x64xf32> to vector<32x64xf32>
    %c2 = arith.constant 2 : index
    %c0_63 = arith.constant 0 : index
    %c0_64 = arith.constant 0 : index
    %124 = vector.load %arg3[%c2, %c0_63, %c0_64] : memref<4x64x64xbf16, #tpu.memory_space<vmem>>, vector<1x64x64xbf16>
    %125 = vector.shape_cast %124 : vector<1x64x64xbf16> to vector<64x64xbf16>
    %126 = arith.truncf %123 : vector<32x64xf32> to vector<32x64xbf16>
    %cst_65 = arith.constant dense<0.000000e+00> : vector<32x64xf32>
    %127 = tpu.matmul %126, %125, %cst_65 {dimension_numbers = #tpu.dot_dimension_numbers<[1], [0], [0], [1], [0, 0, 1, 1], [], []>} : vector<32x64xbf16>, vector<64x64xbf16>, vector<32x64xf32> -> vector<32x64xf32>
    %128 = vector.shape_cast %122 : vector<2x16x64xf32> to vector<32x64xf32>
    %129 = arith.addf %127, %128 : vector<32x64xf32>
    %c2_66 = arith.constant 2 : index
    %c0_67 = arith.constant 0 : index
    %c0_68 = arith.constant 0 : index
    %130 = vector.load %arg6[%c2_66, %c0_67, %c0_68] : memref<3x1x64xf32, #tpu.memory_space<vmem>>, vector<1x1x64xf32>
    %131 = vector.shape_cast %130 : vector<1x1x64xf32> to vector<1x64xf32>
    %132 = vector.broadcast %131 : vector<1x64xf32> to vector<32x64xf32>
    %133 = arith.addf %129, %132 : vector<32x64xf32>
    %cst_69 = arith.constant 5.000000e-01 : f32
    %134 = vector.broadcast %cst_69 : f32 to vector<32x64xf32>
    %135 = arith.mulf %134, %133 : vector<32x64xf32>
    %cst_70 = arith.constant 0.707106769 : f32
    %136 = vector.broadcast %cst_70 : f32 to vector<32x64xf32>
    %137 = arith.mulf %133, %136 : vector<32x64xf32>
    %cst_71 = arith.constant 0.000000e+00 : f32
    %138 = vector.broadcast %cst_71 : f32 to vector<32x64xf32>
    %139 = arith.cmpf oge, %137, %138 : vector<32x64xf32>
    %cst_72 = arith.constant 1.000000e+00 : f32
    %cst_73 = arith.constant -1.000000e+00 : f32
    %140 = vector.broadcast %cst_72 : f32 to vector<32x64xf32>
    %141 = vector.broadcast %cst_73 : f32 to vector<32x64xf32>
    %142 = arith.select %139, %140, %141 : vector<32x64xi1>, vector<32x64xf32>
    %143 = arith.mulf %137, %142 : vector<32x64xf32>
    %cst_74 = arith.constant 0.327591091 : f32
    %144 = vector.broadcast %cst_74 : f32 to vector<32x64xf32>
    %145 = arith.mulf %144, %143 : vector<32x64xf32>
    %cst_75 = arith.constant 1.000000e+00 : f32
    %146 = vector.broadcast %cst_75 : f32 to vector<32x64xf32>
    %147 = arith.addf %146, %145 : vector<32x64xf32>
    %cst_76 = arith.constant 1.000000e+00 : f32
    %148 = vector.broadcast %cst_76 : f32 to vector<32x64xf32>
    %149 = arith.divf %148, %147 : vector<32x64xf32>
    %cst_77 = arith.constant 1.06140542 : f32
    %150 = vector.broadcast %cst_77 : f32 to vector<32x64xf32>
    %151 = arith.mulf %149, %150 : vector<32x64xf32>
    %cst_78 = arith.constant -1.45315206 : f32
    %152 = vector.broadcast %cst_78 : f32 to vector<32x64xf32>
    %153 = arith.addf %152, %151 : vector<32x64xf32>
    %154 = arith.mulf %149, %153 : vector<32x64xf32>
    %cst_79 = arith.constant 1.42141378 : f32
    %155 = vector.broadcast %cst_79 : f32 to vector<32x64xf32>
    %156 = arith.addf %155, %154 : vector<32x64xf32>
    %157 = arith.mulf %149, %156 : vector<32x64xf32>
    %cst_80 = arith.constant -0.284496725 : f32
    %158 = vector.broadcast %cst_80 : f32 to vector<32x64xf32>
    %159 = arith.addf %158, %157 : vector<32x64xf32>
    %160 = arith.mulf %149, %159 : vector<32x64xf32>
    %cst_81 = arith.constant 0.254829586 : f32
    %161 = vector.broadcast %cst_81 : f32 to vector<32x64xf32>
    %162 = arith.addf %161, %160 : vector<32x64xf32>
    %163 = arith.mulf %149, %162 : vector<32x64xf32>
    %164 = arith.mulf %143, %143 : vector<32x64xf32>
    %cst_82 = arith.constant 0.000000e+00 : f32
    %165 = vector.broadcast %cst_82 : f32 to vector<32x64xf32>
    %166 = arith.subf %165, %164 : vector<32x64xf32>
    %167 = math.exp %166 : vector<32x64xf32>
    %168 = arith.mulf %163, %167 : vector<32x64xf32>
    %cst_83 = arith.constant 1.000000e+00 : f32
    %169 = vector.broadcast %cst_83 : f32 to vector<32x64xf32>
    %170 = arith.subf %169, %168 : vector<32x64xf32>
    %171 = arith.mulf %142, %170 : vector<32x64xf32>
    %cst_84 = arith.constant 1.000000e+00 : f32
    %172 = vector.broadcast %cst_84 : f32 to vector<32x64xf32>
    %173 = arith.addf %172, %171 : vector<32x64xf32>
    %174 = arith.mulf %135, %173 : vector<32x64xf32>
    %175 = vector.shape_cast %174 : vector<32x64xf32> to vector<2x16x64xf32>
    %c0_85 = arith.constant 0 : index
    %c0_86 = arith.constant 0 : index
    %c0_87 = arith.constant 0 : index
    %176 = vector.load %arg8[%c0_85, %c0_86, %c0_87] : memref<2x16x64xf32, #tpu.memory_space<vmem>>, vector<2x16x64xf32>
    tpu.vector_store %arg8[%c0_85, %c0_86, %c0_87], %175 {strides = array<i32>} : memref<2x16x64xf32, #tpu.memory_space<vmem>>, vector<2x16x64xf32>,
    return
  }
  func.func @transform_0(%arg0: i32) -> (i32, i32, i32, i32) {
    %c0_i32 = arith.constant 0 : i32
    %c0_i32_0 = arith.constant 0 : i32
    %c0_i32_1 = arith.constant 0 : i32
    %c0_i32_2 = arith.constant 0 : i32
    return %c0_i32, %arg0, %c0_i32_0, %c0_i32_1 : i32, i32, i32, i32
  }
  func.func @transform_1(%arg0: i32) -> (i32, i32, i32, i32) {
    %c0_i32 = arith.constant 0 : i32
    %c0_i32_0 = arith.constant 0 : i32
    %c0_i32_1 = arith.constant 0 : i32
    %c0_i32_2 = arith.constant 0 : i32
    return %c0_i32, %arg0, %c0_i32_0, %c0_i32_1 : i32, i32, i32, i32
  }
  func.func @transform_2(%arg0: i32) -> (i32, i32, i32) {
    %c0_i32 = arith.constant 0 : i32
    %c0_i32_0 = arith.constant 0 : i32
    %c0_i32_1 = arith.constant 0 : i32
    %c0_i32_2 = arith.constant 0 : i32
    return %c0_i32, %c0_i32_0, %c0_i32_1 : i32, i32, i32
  }
  func.func @transform_3(%arg0: i32) -> (i32, i32, i32) {
    %c0_i32 = arith.constant 0 : i32
    %c0_i32_0 = arith.constant 0 : i32
    %c0_i32_1 = arith.constant 0 : i32
    %c0_i32_2 = arith.constant 0 : i32
    return %c0_i32, %c0_i32_0, %c0_i32_1 : i32, i32, i32
  }
  func.func @transform_4(%arg0: i32) -> (i32, i32) {
    %c0_i32 = arith.constant 0 : i32
    %c0_i32_0 = arith.constant 0 : i32
    %c0_i32_1 = arith.constant 0 : i32
    return %c0_i32, %c0_i32_0 : i32, i32
  }
  func.func @transform_5(%arg0: i32) -> (i32, i32, i32) {
    %c0_i32 = arith.constant 0 : i32
    %c0_i32_0 = arith.constant 0 : i32
    %c0_i32_1 = arith.constant 0 : i32
    %c0_i32_2 = arith.constant 0 : i32
    return %c0_i32, %c0_i32_0, %c0_i32_1 : i32, i32, i32
  }
  func.func @transform_6(%arg0: i32) -> (i32, i32, i32) {
    %c0_i32 = arith.constant 0 : i32
    %c0_i32_0 = arith.constant 0 : i32
    %c0_i32_1 = arith.constant 0 : i32
    %c0_i32_2 = arith.constant 0 : i32
    return %c0_i32, %c0_i32_0, %c0_i32_1 : i32, i32, i32
  }
  func.func @transform_7(%arg0: i32) -> (i32, i32, i32) {
    %c0_i32 = arith.constant 0 : i32
    %c0_i32_0 = arith.constant 0 : i32
    %c0_i32_1 = arith.constant 0 : i32
    return %arg0, %c0_i32, %c0_i32_0 : i32, i32, i32
  }
}

</mosaic_0001>

<llo_original>
// kernel: tile.33
$region0: #{tile.33}
  #allocation0 [shape = 's32[1]{0}', space=sflag, size = 0x4, scoped, tag = 'scoped memory for tile.33']
  %s0 = inlined_call_operand.vmem [shape: f32[4], index: 0, kind: input, shape index: {}]
  %s1 = inlined_call_operand.vmem [shape: f32[16,4], index: 1, kind: output, shape index: {}]
  // Predicated region
  $region2: #{tile.33} parent=0 // pred_check
    _
  $region3: #{tile.33} parent=0 // pred_check_branch
    %3 = sbr.rel (0) target = $region5
  $region4: #{tile.33} parent=0 // pred_region
    _
  $region5: #{tile.33} parent=0 // pred_fallthru
    _
  %v4 = vld [vmem:[%s0] ss:$0 sm:$0xff]
  %5 = vst [vmem:[%s1] sm:$0xff] %v4
  %s6 = scalar_lea.vmem %s1, 8
  %7 = vst [vmem:[%s6] sm:$0xff] %v4

// kernel: tile.41
$region0: #{tile.41}
  %s0 = inlined_call_operand.vmem [shape: f32[16,4], index: 0, kind: input, shape index: {}]
  %s1 = inlined_call_operand.vmem [shape: f32[1,64], index: 1, kind: output, shape index: {}]
  $region1: #{tile.41} parent=0
    #allocation0 [shape = 'u8[4096]{0}', space=vmem, size = 0x1000, scoped, tag = 'scoped mem for output reshape']
    %v2 = vld [vmem:[%s0] sm:$0x1]
    %vm3 = vcmask 31744
    %4 = vst.msk [vmem:[#allocation0] sm:$0x1] %vm3, %v2
    %s5 = scalar_lea.vmem %s0, 15
    %v6 = vld [vmem:[%s5] sm:$0x1]
    %7 = vrot.lane.b32.xlu0 %v6, 60
    %v8 = vpop.permute.xlu0 %7
    %vm9 = vcmask 523744
    %10 = vst.msk [vmem:[#allocation0] sm:$0x1] %vm9, %v8
    %s11 = scalar_lea.vmem %s0, 14
    %v12 = vld [vmem:[%s11] sm:$0x1]
    %13 = vrot.lane.b32.xlu0 %v12, 56
    %v14 = vpop.permute.xlu0 %13
    %vm15 = vcmask 490944
    %16 = vst.msk [vmem:[#allocation0] sm:$0x1] %vm15, %v14
    %s17 = scalar_lea.vmem %s0, 13
    %v18 = vld [vmem:[%s17] sm:$0x1]
    %19 = vrot.lane.b32.xlu0 %v18, 52
    %v20 = vpop.permute.xlu0 %19
    %vm21 = vcmask 458144
    %22 = vst.msk [vmem:[#allocation0] sm:$0x1] %vm21, %v20
    %s23 = scalar_lea.vmem %s0, 12
    %v24 = vld [vmem:[%s23] sm:$0x1]
    %25 = vrot.lane.b32.xlu0 %v24, 48
    %v26 = vpop.permute.xlu0 %25
    %vm27 = vcmask 425344
    %28 = vst.msk [vmem:[#allocation0] sm:$0x1] %vm27, %v26
    %s29 = scalar_lea.vmem %s0, 11
    %v30 = vld [vmem:[%s29] sm:$0x1]
    %31 = vrot.lane.b32.xlu0 %v30, 44
    %v32 = vpop.permute.xlu0 %31
    %vm33 = vcmask 392544
    %34 = vst.msk [vmem:[#allocation0] sm:$0x1] %vm33, %v32
    %s35 = scalar_lea.vmem %s0, 10
    %v36 = vld [vmem:[%s35] sm:$0x1]
    %37 = vrot.lane.b32.xlu0 %v36, 40
    %v38 = vpop.permute.xlu0 %37
    %vm39 = vcmask 359744
    %40 = vst.msk [vmem:[#allocation0] sm:$0x1] %vm39, %v38
    %s41 = scalar_lea.vmem %s0, 9
    %v42 = vld [vmem:[%s41] sm:$0x1]
    %43 = vrot.lane.b32.xlu0 %v42, 36
    %v44 = vpop.permute.xlu0 %43
    %vm45 = vcmask 326944
    %46 = vst.msk [vmem:[#allocation0] sm:$0x1] %vm45, %v44
    %s47 = scalar_lea.vmem %s0, 8
    %v48 = vld [vmem:[%s47] sm:$0x1]
    %49 = vrot.lane.b32.xlu0 %v48, 32
    %v50 = vpop.permute.xlu0 %49
    %vm51 = vcmask 294144
    %52 = vst.msk [vmem:[#allocation0] sm:$0x1] %vm51, %v50
    %s53 = scalar_lea.vmem %s0, 7
    %v54 = vld [vmem:[%s53] sm:$0x1]
    %55 = vrot.lane.b32.xlu0 %v54, 28
    %v56 = vpop.permute.xlu0 %55
    %vm57 = vcmask 261344
    %58 = vst.msk [vmem:[#allocation0] sm:$0x1] %vm57, %v56
    %s59 = scalar_lea.vmem %s0, 6
    %v60 = vld [vmem:[%s59] sm:$0x1]
    %61 = vrot.lane.b32.xlu0 %v60, 24
    %v62 = vpop.permute.xlu0 %61
    %vm63 = vcmask 228544
    %64 = vst.msk [vmem:[#allocation0] sm:$0x1] %vm63, %v62
    %s65 = scalar_lea.vmem %s0, 5
    %v66 = vld [vmem:[%s65] sm:$0x1]
    %67 = vrot.lane.b32.xlu0 %v66, 20
    %v68 = vpop.permute.xlu0 %67
    %vm69 = vcmask 195744
    %70 = vst.msk [vmem:[#allocation0] sm:$0x1] %vm69, %v68
    %s71 = scalar_lea.vmem %s0, 4
    %v72 = vld [vmem:[%s71] sm:$0x1]
    %73 = vrot.lane.b32.xlu0 %v72, 16
    %v74 = vpop.permute.xlu0 %73
    %vm75 = vcmask 162944
    %76 = vst.msk [vmem:[#allocation0] sm:$0x1] %vm75, %v74
    %s77 = scalar_lea.vmem %s0, 3
    %v78 = vld [vmem:[%s77] sm:$0x1]
    %79 = vrot.lane.b32.xlu0 %v78, 12
    %v80 = vpop.permute.xlu0 %79
    %vm81 = vcmask 130144
    %82 = vst.msk [vmem:[#allocation0] sm:$0x1] %vm81, %v80
    %s83 = scalar_lea.vmem %s0, 2
    %v84 = vld [vmem:[%s83] sm:$0x1]
    %85 = vrot.lane.b32.xlu0 %v84, 8
    %v86 = vpop.permute.xlu0 %85
    %vm87 = vcmask 97344
    %88 = vst.msk [vmem:[#allocation0] sm:$0x1] %vm87, %v86
    %s89 = scalar_lea.vmem %s0, 1
    %v90 = vld [vmem:[%s89] sm:$0x1]
    %91 = vrot.lane.b32.xlu0 %v90, 4
    %v92 = vpop.permute.xlu0 %91
    %vm93 = vcmask 64544
    %94 = vst.msk [vmem:[#allocation0] sm:$0x1] %vm93, %v92
    %s96 = sshllo.u32 0, 1
    %v98 = vld [vmem:[#allocation0] sm:%s96]
    %s99 = sshllo.u32 0, 1
    %100 = vst [vmem:[%s1] sm:%s99] %v98

// kernel: _lambda_.1
$region0: #{_lambda_.1}
  #allocation0 [shape = 'u32[]', space=smem, size = 0x4, offset = 0x4, fixed_abs, tag = 'smem constant byte address 0x4 - core index']
  #allocation1 [shape = 'u32[144,128]{1,0:T(1,128)}', space=vmem, size = 0x12000, scoped, tag = 'internal scratch']
  %s0 = inlined_call_operand.vmem [shape: bf16[2,2,16,64], index: 0, kind: input, shape index: {}]
  %s1 = inlined_call_operand.vmem [shape: bf16[2,2,16,64], index: 1, kind: input, shape index: {}]
  %s2 = inlined_call_operand.vmem [shape: bf16[4,64,64], index: 2, kind: input, shape index: {}]
  %s3 = inlined_call_operand.vmem [shape: bf16[2,64,64], index: 3, kind: input, shape index: {}]
  %s4 = inlined_call_operand.vmem [shape: bf16[64,16], index: 4, kind: input, shape index: {}]
  %s5 = inlined_call_operand.vmem [shape: f32[3,1,64], index: 5, kind: input, shape index: {}]
  %s6 = inlined_call_operand.vmem [shape: f32[2,1,64], index: 6, kind: input, shape index: {}]
  %s7 = inlined_call_operand.vmem [shape: f32[2,16,64], index: 7, kind: output, shape index: {}]
  %s8 = sld [smem:[#allocation0]]
  $region38: #{_lambda_.1} parent=0
    _
  %s10 = ssub.s32 1, %s8
  %s11 = scalar_select 0, %s10, %s8
  // Predicated region
  $region2: #{_lambda_.1} parent=0 // pred_check
    _
  $region3: #{_lambda_.1} parent=0 // pred_check_branch
    %13 = sbr.rel (0) target = $region5
  $region4: #{_lambda_.1} parent=0 // pred_region
    _
  $region5: #{_lambda_.1} parent=0 // pred_fallthru
    _
  // Predicated region
  $region6: #{_lambda_.1} parent=0 // pred_check
    _
  $region7: #{_lambda_.1} parent=0 // pred_check_branch
    %15 = sbr.rel (0) target = $region9
  $region8: #{_lambda_.1} parent=0 // pred_region
    _
  $region9: #{_lambda_.1} parent=0 // pred_fallthru
    _
  // Predicated region
  $region10: #{_lambda_.1} parent=0 // pred_check
    _
  $region11: #{_lambda_.1} parent=0 // pred_check_branch
    %17 = sbr.rel (0) target = $region13
  $region12: #{_lambda_.1} parent=0 // pred_region
    _
  $region13: #{_lambda_.1} parent=0 // pred_fallthru
    _
  // Predicated region
  $region14: #{_lambda_.1} parent=0 // pred_check
    _
  $region15: #{_lambda_.1} parent=0 // pred_check_branch
    %19 = sbr.rel (0) target = $region17
  $region16: #{_lambda_.1} parent=0 // pred_region
    _
  $region17: #{_lambda_.1} parent=0 // pred_fallthru
    _
  // Predicated region
  $region18: #{_lambda_.1} parent=0 // pred_check
    _
  $region19: #{_lambda_.1} parent=0 // pred_check_branch
    %21 = sbr.rel (0) target = $region21
  $region20: #{_lambda_.1} parent=0 // pred_region
    _
  $region21: #{_lambda_.1} parent=0 // pred_fallthru
    _
  // Predicated region
  $region22: #{_lambda_.1} parent=0 // pred_check
    _
  $region23: #{_lambda_.1} parent=0 // pred_check_branch
    %23 = sbr.rel (0) target = $region25
  $region24: #{_lambda_.1} parent=0 // pred_region
    _
  $region25: #{_lambda_.1} parent=0 // pred_fallthru
    _
  // Predicated region
  $region26: #{_lambda_.1} parent=0 // pred_check
    _
  $region27: #{_lambda_.1} parent=0 // pred_check_branch
    %25 = sbr.rel (0) target = $region29
  $region28: #{_lambda_.1} parent=0 // pred_region
    _
  $region29: #{_lambda_.1} parent=0 // pred_fallthru
    _
  %v27 = vld [vmem:[%s0] sm:$0xf]
  %v28 = vld [vmem:[%s0 + $0x4] sm:$0xf]
  %v29 = vld [vmem:[%s0 + $0x8] sm:$0xf]
  %v30 = vld [vmem:[%s0 + $0xc] sm:$0xf]
  %s31 = scalar_lea.vmem %s0, 16
  %v32 = vld [vmem:[%s31] sm:$0xf]
  %v33 = vld [vmem:[%s31 + $0x4] sm:$0xf]
  %v34 = vld [vmem:[%s31 + $0x8] sm:$0xf]
  %v35 = vld [vmem:[%s31 + $0xc] sm:$0xf]
  %v36 = vld [vmem:[%s1] sm:$0xf]
  %v37 = vld [vmem:[%s1 + $0x4] sm:$0xf]
  %v38 = vld [vmem:[%s1 + $0x8] sm:$0xf]
  %v39 = vld [vmem:[%s1 + $0xc] sm:$0xf]
  %s40 = scalar_lea.vmem %s1, 16
  %v41 = vld [vmem:[%s40] sm:$0xf]
  %v42 = vld [vmem:[%s40 + $0x4] sm:$0xf]
  %v43 = vld [vmem:[%s40 + $0x8] sm:$0xf]
  %v44 = vld [vmem:[%s40 + $0xc] sm:$0xf]
  %v45 = vld [vmem:[%s2] sm:$0xf]
  %v46 = vld [vmem:[%s2 + $0x4] sm:$0xf]
  %v47 = vld [vmem:[%s2 + $0x8] sm:$0xf]
  %v48 = vld [vmem:[%s2 + $0xc] sm:$0xf]
  %v49 = vld [vmem:[%s2 + $0x10] sm:$0xf]
  %v50 = vld [vmem:[%s2 + $0x14] sm:$0xf]
  %v51 = vld [vmem:[%s2 + $0x18] sm:$0xf]
  %v52 = vld [vmem:[%s2 + $0x1c] sm:$0xf]
  %v53 = vld [vmem:[%s5] sm:$0x1]
  %v55 = vlaneseq
  %v56 = vshrl.u32 %v55, 7
  %v57 = vsub.s32 0, %v56
  %v58 = vrot.slane %v53, %v57
  %v64 = vunpack.c.l.b16 %v27
  %v65 = vunpack.c.l.b16 %v28
  %v66 = vunpack.c.l.b16 %v29
  %v67 = vunpack.c.l.b16 %v30
  %v68 = vpack.c.b16 %v65, %v64
  %v69 = vpack.c.b16 %v67, %v66
  %v78 = vunpack.c.l.b16 %v45
  %v79 = vunpack.c.l.b16 %v46
  %v80 = vunpack.c.l.b16 %v47
  %v81 = vunpack.c.l.b16 %v48
  %v82 = vunpack.c.l.b16 %v49
  %v83 = vunpack.c.l.b16 %v50
  %v84 = vunpack.c.l.b16 %v51
  %v85 = vunpack.c.l.b16 %v52
  %v86 = vpack.c.b16 %v79, %v78
  %v87 = vpack.c.b16 %v81, %v80
  %v88 = vpack.c.b16 %v83, %v82
  %v89 = vpack.c.b16 %v85, %v84
  %vm94 = vcmask 523264
  %v96 = vsel %vm94, %v68, 0
  %v99 = vsel %vm94, %v69, 0
  %101 = vmatprep.subr.bf16.mxu0 0
  %102 = vmatpush1.bf16.msra.mxu0 %v86
  %103 = vmatprep.subr.bf16.mxu0 0
  %104 = vmatpush1.bf16.msra.mxu0 %v87
  %105 = vmatprep.subr.bf16.mxu0 0
  %106 = vmatpush1.bf16.msra.mxu0 %v88
  %107 = vmatprep.subr.bf16.mxu0 0
  %108 = vmatpush1.bf16.msra.mxu0 %v89
  %109 = vmatprep.subr.bf16.mxu0 0
  %110 = vmatpush1.bf16.msra.mxu0 0
  %111 = vmatprep.subr.bf16.mxu0 0
  %112 = vmatpush1.bf16.msra.mxu0 0
  %113 = vmatprep.subr.bf16.mxu0 0
  %114 = vmatpush1.bf16.msra.mxu0 0
  %115 = vmatprep.subr.bf16.mxu0 0
  %116 = vmatpush1.bf16.msra.mxu0 0
  %117 = vmatprep.subr.bf16.mxu0 0
  %118 = vmatpush1.bf16.msra.mxu0 0
  %119 = vmatprep.subr.bf16.mxu0 0
  %120 = vmatpush1.bf16.msra.mxu0 0
  %121 = vmatprep.subr.bf16.mxu0 0
  %122 = vmatpush1.bf16.msra.mxu0 0
  %123 = vmatprep.subr.bf16.mxu0 0
  %124 = vmatpush1.bf16.msra.mxu0 0
  %125 = vmatprep.subr.bf16.mxu0 0
  %126 = vmatpush1.bf16.msra.mxu0 0
  %127 = vmatprep.subr.bf16.mxu0 0
  %128 = vmatpush1.bf16.msra.mxu0 0
  %129 = vmatprep.subr.bf16.mxu0 0
  %130 = vmatpush1.bf16.msra.mxu0 0
  %131 = vmatprep.subr.bf16.mxu0 0
  %132 = vmatpush1.bf16.msra.mxu0 0
  %133 = vmatprep.mubr.bf16.mxu0 0
  %134 = vmatmul.mubr.bf16.gmra.mrb[0].mxu0 %v96
  %v135 = vpop.f32.mrb[0].mxu0
  %v136 = vadd.f32 %v58, %v135
  %v137 = vpop.f32.mrb[0].mxu0
  %v138 = vpop.f32.mrb[0].mxu0
  %v139 = vadd.f32 %v58, %v138
  %v140 = vpop.f32.mrb[0].mxu0
  %141 = vmatprep.mubr.bf16.mxu0 0
  %142 = vmatmul.mubr.bf16.gmra.mrb[0].mxu0 %v99
  %v143 = vpop.f32.mrb[0].mxu0
  %v144 = vadd.f32 %v58, %v143
  %v145 = vpop.f32.mrb[0].mxu0
  %v146 = vpop.f32.mrb[0].mxu0
  %v147 = vadd.f32 %v58, %v146
  %v148 = vpop.f32.mrb[0].mxu0
  %149 = vdwg.mxu0
  %s150 = scalar_lea.vmem %s2, 32
  %v151 = vld [vmem:[%s150] sm:$0xf]
  %v152 = vld [vmem:[%s150 + $0x4] sm:$0xf]
  %v153 = vld [vmem:[%s150 + $0x8] sm:$0xf]
  %v154 = vld [vmem:[%s150 + $0xc] sm:$0xf]
  %v155 = vld [vmem:[%s150 + $0x10] sm:$0xf]
  %v156 = vld [vmem:[%s150 + $0x14] sm:$0xf]
  %v157 = vld [vmem:[%s150 + $0x18] sm:$0xf]
  %v158 = vld [vmem:[%s150 + $0x1c] sm:$0xf]
  %s159 = scalar_lea.vmem %s5, 1
  %v160 = vld [vmem:[%s159] sm:$0x1]
  %v162 = vlaneseq
  %v163 = vshrl.u32 %v162, 7
  %v164 = vsub.s32 0, %v163
  %v165 = vrot.slane %v160, %v164
  %v171 = vunpack.c.l.b16 %v32
  %v172 = vunpack.c.l.b16 %v33
  %v173 = vunpack.c.l.b16 %v34
  %v174 = vunpack.c.l.b16 %v35
  %v175 = vpack.c.b16 %v172, %v171
  %v176 = vpack.c.b16 %v174, %v173
  %v185 = vunpack.c.l.b16 %v151
  %v186 = vunpack.c.l.b16 %v152
  %v187 = vunpack.c.l.b16 %v153
  %v188 = vunpack.c.l.b16 %v154
  %v189 = vunpack.c.l.b16 %v155
  %v190 = vunpack.c.l.b16 %v156
  %v191 = vunpack.c.l.b16 %v157
  %v192 = vunpack.c.l.b16 %v158
  %v193 = vpack.c.b16 %v186, %v185
  %v194 = vpack.c.b16 %v188, %v187
  %v195 = vpack.c.b16 %v190, %v189
  %v196 = vpack.c.b16 %v192, %v191
  %v202 = vsel %vm94, %v175, 0
  %v205 = vsel %vm94, %v176, 0
  %207 = vmatprep.subr.bf16.mxu0 0
  %208 = vmatpush1.bf16.msra.mxu0 %v193
  %209 = vmatprep.subr.bf16.mxu0 0
  %210 = vmatpush1.bf16.msra.mxu0 %v194
  %211 = vmatprep.subr.bf16.mxu0 0
  %212 = vmatpush1.bf16.msra.mxu0 %v195
  %213 = vmatprep.subr.bf16.mxu0 0
  %214 = vmatpush1.bf16.msra.mxu0 %v196
  %215 = vmatprep.subr.bf16.mxu0 0
  %216 = vmatpush1.bf16.msra.mxu0 0
  %217 = vmatprep.subr.bf16.mxu0 0
  %218 = vmatpush1.bf16.msra.mxu0 0
  %219 = vmatprep.subr.bf16.mxu0 0
  %220 = vmatpush1.bf16.msra.mxu0 0
  %221 = vmatprep.subr.bf16.mxu0 0
  %222 = vmatpush1.bf16.msra.mxu0 0
  %223 = vmatprep.subr.bf16.mxu0 0
  %224 = vmatpush1.bf16.msra.mxu0 0
  %225 = vmatprep.subr.bf16.mxu0 0
  %226 = vmatpush1.bf16.msra.mxu0 0
  %227 = vmatprep.subr.bf16.mxu0 0
  %228 = vmatpush1.bf16.msra.mxu0 0
  %229 = vmatprep.subr.bf16.mxu0 0
  %230 = vmatpush1.bf16.msra.mxu0 0
  %231 = vmatprep.subr.bf16.mxu0 0
  %232 = vmatpush1.bf16.msra.mxu0 0
  %233 = vmatprep.subr.bf16.mxu0 0
  %234 = vmatpush1.bf16.msra.mxu0 0
  %235 = vmatprep.subr.bf16.mxu0 0
  %236 = vmatpush1.bf16.msra.mxu0 0
  %237 = vmatprep.subr.bf16.mxu0 0
  %238 = vmatpush1.bf16.msra.mxu0 0
  %239 = vmatprep.mubr.bf16.mxu0 0
  %240 = vmatmul.mubr.bf16.gmra.mrb[0].mxu0 %v202
  %v241 = vpop.f32.mrb[0].mxu0
  %v242 = vadd.f32 %v165, %v241
  %v243 = vpop.f32.mrb[0].mxu0
  %v244 = vpop.f32.mrb[0].mxu0
  %v245 = vadd.f32 %v165, %v244
  %v246 = vpop.f32.mrb[0].mxu0
  %247 = vmatprep.mubr.bf16.mxu0 0
  %248 = vmatmul.mubr.bf16.gmra.mrb[0].mxu0 %v205
  %v249 = vpop.f32.mrb[0].mxu0
  %v250 = vadd.f32 %v165, %v249
  %v251 = vpop.f32.mrb[0].mxu0
  %v252 = vpop.f32.mrb[0].mxu0
  %v253 = vadd.f32 %v165, %v252
  %v254 = vpop.f32.mrb[0].mxu0
  %255 = vdwg.mxu0
  %v256 = vld [vmem:[%s3] sm:$0xf]
  %v257 = vld [vmem:[%s3 + $0x4] sm:$0xf]
  %v258 = vld [vmem:[%s3 + $0x8] sm:$0xf]
  %v259 = vld [vmem:[%s3 + $0xc] sm:$0xf]
  %v260 = vld [vmem:[%s3 + $0x10] sm:$0xf]
  %v261 = vld [vmem:[%s3 + $0x14] sm:$0xf]
  %v262 = vld [vmem:[%s3 + $0x18] sm:$0xf]
  %v263 = vld [vmem:[%s3 + $0x1c] sm:$0xf]
  %v264 = vld [vmem:[%s6] sm:$0x1]
  %v266 = vlaneseq
  %v267 = vshrl.u32 %v266, 7
  %v268 = vsub.s32 0, %v267
  %v269 = vrot.slane %v264, %v268
  %v275 = vunpack.c.l.b16 %v36
  %v276 = vunpack.c.l.b16 %v37
  %v277 = vunpack.c.l.b16 %v38
  %v278 = vunpack.c.l.b16 %v39
  %v279 = vpack.c.b16 %v276, %v275
  %v280 = vpack.c.b16 %v278, %v277
  %v289 = vunpack.c.l.b16 %v256
  %v290 = vunpack.c.l.b16 %v257
  %v291 = vunpack.c.l.b16 %v258
  %v292 = vunpack.c.l.b16 %v259
  %v293 = vunpack.c.l.b16 %v260
  %v294 = vunpack.c.l.b16 %v261
  %v295 = vunpack.c.l.b16 %v262
  %v296 = vunpack.c.l.b16 %v263
  %v297 = vpack.c.b16 %v290, %v289
  %v298 = vpack.c.b16 %v292, %v291
  %v299 = vpack.c.b16 %v294, %v293
  %v300 = vpack.c.b16 %v296, %v295
  %v306 = vsel %vm94, %v279, 0
  %v309 = vsel %vm94, %v280, 0
  %311 = vmatprep.subr.bf16.mxu0 0
  %312 = vmatpush1.bf16.msra.mxu0 %v297
  %313 = vmatprep.subr.bf16.mxu0 0
  %314 = vmatpush1.bf16.msra.mxu0 %v298
  %315 = vmatprep.subr.bf16.mxu0 0
  %316 = vmatpush1.bf16.msra.mxu0 %v299
  %317 = vmatprep.subr.bf16.mxu0 0
  %318 = vmatpush1.bf16.msra.mxu0 %v300
  %319 = vmatprep.subr.bf16.mxu0 0
  %320 = vmatpush1.bf16.msra.mxu0 0
  %321 = vmatprep.subr.bf16.mxu0 0
  %322 = vmatpush1.bf16.msra.mxu0 0
  %323 = vmatprep.subr.bf16.mxu0 0
  %324 = vmatpush1.bf16.msra.mxu0 0
  %325 = vmatprep.subr.bf16.mxu0 0
  %326 = vmatpush1.bf16.msra.mxu0 0
  %327 = vmatprep.subr.bf16.mxu0 0
  %328 = vmatpush1.bf16.msra.mxu0 0
  %329 = vmatprep.subr.bf16.mxu0 0
  %330 = vmatpush1.bf16.msra.mxu0 0
  %331 = vmatprep.subr.bf16.mxu0 0
  %332 = vmatpush1.bf16.msra.mxu0 0
  %333 = vmatprep.subr.bf16.mxu0 0
  %334 = vmatpush1.bf16.msra.mxu0 0
  %335 = vmatprep.subr.bf16.mxu0 0
  %336 = vmatpush1.bf16.msra.mxu0 0
  %337 = vmatprep.subr.bf16.mxu0 0
  %338 = vmatpush1.bf16.msra.mxu0 0
  %339 = vmatprep.subr.bf16.mxu0 0
  %340 = vmatpush1.bf16.msra.mxu0 0
  %341 = vmatprep.subr.bf16.mxu0 0
  %342 = vmatpush1.bf16.msra.mxu0 0
  %343 = vmatprep.mubr.bf16.mxu0 0
  %344 = vmatmul.mubr.bf16.gmra.mrb[0].mxu0 %v306
  %v345 = vpop.f32.mrb[0].mxu0
  %v346 = vadd.f32 %v269, %v345
  %v347 = vpop.f32.mrb[0].mxu0
  %v348 = vpop.f32.mrb[0].mxu0
  %v349 = vadd.f32 %v269, %v348
  %v350 = vpop.f32.mrb[0].mxu0
  %351 = vmatprep.mubr.bf16.mxu0 0
  %352 = vmatmul.mubr.bf16.gmra.mrb[0].mxu0 %v309
  %v353 = vpop.f32.mrb[0].mxu0
  %v354 = vadd.f32 %v269, %v353
  %v355 = vpop.f32.mrb[0].mxu0
  %v356 = vpop.f32.mrb[0].mxu0
  %v357 = vadd.f32 %v269, %v356
  %v358 = vpop.f32.mrb[0].mxu0
  %359 = vdwg.mxu0
  %s360 = scalar_lea.vmem %s3, 32
  %v361 = vld [vmem:[%s360] sm:$0xf]
  %v362 = vld [vmem:[%s360 + $0x4] sm:$0xf]
  %v363 = vld [vmem:[%s360 + $0x8] sm:$0xf]
  %v364 = vld [vmem:[%s360 + $0xc] sm:$0xf]
  %v365 = vld [vmem:[%s360 + $0x10] sm:$0xf]
  %v366 = vld [vmem:[%s360 + $0x14] sm:$0xf]
  %v367 = vld [vmem:[%s360 + $0x18] sm:$0xf]
  %v368 = vld [vmem:[%s360 + $0x1c] sm:$0xf]
  %s369 = scalar_lea.vmem %s6, 1
  %v370 = vld [vmem:[%s369] sm:$0x1]
  %v372 = vlaneseq
  %v373 = vshrl.u32 %v372, 7
  %v374 = vsub.s32 0, %v373
  %v375 = vrot.slane %v370, %v374
  %v381 = vunpack.c.l.b16 %v41
  %v382 = vunpack.c.l.b16 %v42
  %v383 = vunpack.c.l.b16 %v43
  %v384 = vunpack.c.l.b16 %v44
  %v385 = vpack.c.b16 %v382, %v381
  %v386 = vpack.c.b16 %v384, %v383
  %v395 = vunpack.c.l.b16 %v361
  %v396 = vunpack.c.l.b16 %v362
  %v397 = vunpack.c.l.b16 %v363
  %v398 = vunpack.c.l.b16 %v364
  %v399 = vunpack.c.l.b16 %v365
  %v400 = vunpack.c.l.b16 %v366
  %v401 = vunpack.c.l.b16 %v367
  %v402 = vunpack.c.l.b16 %v368
  %v403 = vpack.c.b16 %v396, %v395
  %v404 = vpack.c.b16 %v398, %v397
  %v405 = vpack.c.b16 %v400, %v399
  %v406 = vpack.c.b16 %v402, %v401
  %v412 = vsel %vm94, %v385, 0
  %v415 = vsel %vm94, %v386, 0
  %417 = vmatprep.subr.bf16.mxu0 0
  %418 = vmatpush1.bf16.msra.mxu0 %v403
  %419 = vmatprep.subr.bf16.mxu0 0
  %420 = vmatpush1.bf16.msra.mxu0 %v404
  %421 = vmatprep.subr.bf16.mxu0 0
  %422 = vmatpush1.bf16.msra.mxu0 %v405
  %423 = vmatprep.subr.bf16.mxu0 0
  %424 = vmatpush1.bf16.msra.mxu0 %v406
  %425 = vmatprep.subr.bf16.mxu0 0
  %426 = vmatpush1.bf16.msra.mxu0 0
  %427 = vmatprep.subr.bf16.mxu0 0
  %428 = vmatpush1.bf16.msra.mxu0 0
  %429 = vmatprep.subr.bf16.mxu0 0
  %430 = vmatpush1.bf16.msra.mxu0 0
  %431 = vmatprep.subr.bf16.mxu0 0
  %432 = vmatpush1.bf16.msra.mxu0 0
  %433 = vmatprep.subr.bf16.mxu0 0
  %434 = vmatpush1.bf16.msra.mxu0 0
  %435 = vmatprep.subr.bf16.mxu0 0
  %436 = vmatpush1.bf16.msra.mxu0 0
  %437 = vmatprep.subr.bf16.mxu0 0
  %438 = vmatpush1.bf16.msra.mxu0 0
  %439 = vmatprep.subr.bf16.mxu0 0
  %440 = vmatpush1.bf16.msra.mxu0 0
  %441 = vmatprep.subr.bf16.mxu0 0
  %442 = vmatpush1.bf16.msra.mxu0 0
  %443 = vmatprep.subr.bf16.mxu0 0
  %444 = vmatpush1.bf16.msra.mxu0 0
  %445 = vmatprep.subr.bf16.mxu0 0
  %446 = vmatpush1.bf16.msra.mxu0 0
  %447 = vmatprep.subr.bf16.mxu0 0
  %448 = vmatpush1.bf16.msra.mxu0 0
  %449 = vmatprep.mubr.bf16.mxu0 0
  %450 = vmatmul.mubr.bf16.gmra.mrb[0].mxu0 %v412
  %v451 = vpop.f32.mrb[0].mxu0
  %v452 = vadd.f32 %v375, %v451
  %v453 = vpop.f32.mrb[0].mxu0
  %v454 = vpop.f32.mrb[0].mxu0
  %v455 = vadd.f32 %v375, %v454
  %v456 = vpop.f32.mrb[0].mxu0
  %457 = vmatprep.mubr.bf16.mxu0 0
  %458 = vmatmul.mubr.bf16.gmra.mrb[0].mxu0 %v415
  %v459 = vpop.f32.mrb[0].mxu0
  %v460 = vadd.f32 %v375, %v459
  %v461 = vpop.f32.mrb[0].mxu0
  %v462 = vpop.f32.mrb[0].mxu0
  %v463 = vadd.f32 %v375, %v462
  %v464 = vpop.f32.mrb[0].mxu0
  %465 = vdwg.mxu0
  %v466 = vmul.f32 %v242, %v242
  %v467 = vmul.f32 %v245, %v245
  %v468 = vmul.f32 %v250, %v250
  %v469 = vmul.f32 %v253, %v253
  %v470 = vsel %vm94, %v466, 0.0
  %471 = vadd.xlane.f32.xlu0 %v470
  %v472 = vpop.xlane.xlu0 %471
  %v473 = vsel %vm94, %v467, 0.0
  %474 = vadd.xlane.f32.xlu0 %v473
  %v475 = vpop.xlane.xlu0 %474
  %v476 = vsel %vm94, %v468, 0.0
  %477 = vadd.xlane.f32.xlu0 %v476
  %v478 = vpop.xlane.xlu0 %477
  %v479 = vsel %vm94, %v469, 0.0
  %480 = vadd.xlane.f32.xlu0 %v479
  %v481 = vpop.xlane.xlu0 %480
  %v482 = vmax.f32 %v472, 1e-24
  %v483 = vmax.f32 %v475, 1e-24
  %v484 = vmax.f32 %v478, 1e-24
  %v485 = vmax.f32 %v481, 1e-24
  %v486 = vrsqrt.pop %v482
  %v487 = vrsqrt.pop %v483
  %v488 = vrsqrt.pop %v484
  %v489 = vrsqrt.pop %v485
  %v490 = vmul.f32 %v242, %v486
  %v491 = vmul.f32 %v245, %v487
  %v492 = vmul.f32 %v250, %v488
  %v493 = vmul.f32 %v253, %v489
  %v494 = vmul.f32 %v136, %v136
  %v495 = vmul.f32 %v139, %v139
  %v496 = vmul.f32 %v144, %v144
  %v497 = vmul.f32 %v147, %v147
  %v498 = vsel %vm94, %v494, 0.0
  %499 = vadd.xlane.f32.xlu0 %v498
  %v500 = vpop.xlane.xlu0 %499
  %v501 = vsel %vm94, %v495, 0.0
  %502 = vadd.xlane.f32.xlu0 %v501
  %v503 = vpop.xlane.xlu0 %502
  %v504 = vsel %vm94, %v496, 0.0
  %505 = vadd.xlane.f32.xlu0 %v504
  %v506 = vpop.xlane.xlu0 %505
  %v507 = vsel %vm94, %v497, 0.0
  %508 = vadd.xlane.f32.xlu0 %v507
  %v509 = vpop.xlane.xlu0 %508
  %v510 = vmax.f32 %v500, 1e-24
  %v511 = vmax.f32 %v503, 1e-24
  %v512 = vmax.f32 %v506, 1e-24
  %v513 = vmax.f32 %v509, 1e-24
  %v514 = vrsqrt.pop %v510
  %v515 = vrsqrt.pop %v511
  %v516 = vrsqrt.pop %v512
  %v517 = vrsqrt.pop %v513
  %v518 = vmul.f32 %v136, %v514
  %v519 = vmul.f32 %v139, %v515
  %v520 = vmul.f32 %v144, %v516
  %v521 = vmul.f32 %v147, %v517
  %v522 = vpack.c.bf16 %v491, %v490
  %v523 = vpack.c.bf16 %v493, %v492
  %v524 = vpack.c.bf16 %v519, %v518
  %v525 = vpack.c.bf16 %v521, %v520
  %v527 = vsel %vm94, %v522, 0
  %v530 = vsel %vm94, %v524, 0
  %532 = vmatprep.subr.bf16.mxu0 0
  %533 = vmatpush1.bf16.xpose.msra.mxu0 %v530
  %534 = vmatprep.subr.bf16.mxu0 0
  %535 = vmatpush1.bf16.xpose.msra.mxu0 0
  %536 = vmatprep.subr.bf16.mxu0 0
  %537 = vmatpush1.bf16.xpose.msra.mxu0 0
  %538 = vmatprep.subr.bf16.mxu0 0
  %539 = vmatpush1.bf16.xpose.msra.mxu0 0
  %540 = vmatprep.subr.bf16.mxu0 0
  %541 = vmatpush1.bf16.xpose.msra.mxu0 0
  %542 = vmatprep.subr.bf16.mxu0 0
  %543 = vmatpush1.bf16.xpose.msra.mxu0 0
  %544 = vmatprep.subr.bf16.mxu0 0
  %545 = vmatpush1.bf16.xpose.msra.mxu0 0
  %546 = vmatprep.subr.bf16.mxu0 0
  %547 = vmatpush1.bf16.xpose.msra.mxu0 0
  %548 = vmatprep.subr.bf16.mxu0 0
  %549 = vmatpush1.bf16.xpose.msra.mxu0 0
  %550 = vmatprep.subr.bf16.mxu0 0
  %551 = vmatpush1.bf16.xpose.msra.mxu0 0
  %552 = vmatprep.subr.bf16.mxu0 0
  %553 = vmatpush1.bf16.xpose.msra.mxu0 0
  %554 = vmatprep.subr.bf16.mxu0 0
  %555 = vmatpush1.bf16.xpose.msra.mxu0 0
  %556 = vmatprep.subr.bf16.mxu0 0
  %557 = vmatpush1.bf16.xpose.msra.mxu0 0
  %558 = vmatprep.subr.bf16.mxu0 0
  %559 = vmatpush1.bf16.xpose.msra.mxu0 0
  %560 = vmatprep.subr.bf16.mxu0 0
  %561 = vmatpush1.bf16.xpose.msra.mxu0 0
  %562 = vmatprep.subr.bf16.mxu0 0
  %563 = vmatpush1.bf16.xpose.msra.mxu0 0
  %564 = vmatprep.mubr.bf16.mxu0 0
  %565 = vmatmul.mubr.bf16.gmra.mrb[0].mxu0 %v527
  %v566 = vpop.f32.mrb[0].mxu0
  %v567 = vadd.f32 0.0, %v566
  %v568 = vpop.f32.mrb[0].mxu0
  %v569 = vpop.f32.mrb[0].mxu0
  %v570 = vadd.f32 0.0, %v569
  %v571 = vpop.f32.mrb[0].mxu0
  %572 = vdwg.mxu0
  %v574 = vsel %vm94, %v523, 0
  %v577 = vsel %vm94, %v525, 0
  %579 = vmatprep.subr.bf16.mxu0 0
  %580 = vmatpush1.bf16.xpose.msra.mxu0 %v577
  %581 = vmatprep.subr.bf16.mxu0 0
  %582 = vmatpush1.bf16.xpose.msra.mxu0 0
  %583 = vmatprep.subr.bf16.mxu0 0
  %584 = vmatpush1.bf16.xpose.msra.mxu0 0
  %585 = vmatprep.subr.bf16.mxu0 0
  %586 = vmatpush1.bf16.xpose.msra.mxu0 0
  %587 = vmatprep.subr.bf16.mxu0 0
  %588 = vmatpush1.bf16.xpose.msra.mxu0 0
  %589 = vmatprep.subr.bf16.mxu0 0
  %590 = vmatpush1.bf16.xpose.msra.mxu0 0
  %591 = vmatprep.subr.bf16.mxu0 0
  %592 = vmatpush1.bf16.xpose.msra.mxu0 0
  %593 = vmatprep.subr.bf16.mxu0 0
  %594 = vmatpush1.bf16.xpose.msra.mxu0 0
  %595 = vmatprep.subr.bf16.mxu0 0
  %596 = vmatpush1.bf16.xpose.msra.mxu0 0
  %597 = vmatprep.subr.bf16.mxu0 0
  %598 = vmatpush1.bf16.xpose.msra.mxu0 0
  %599 = vmatprep.subr.bf16.mxu0 0
  %600 = vmatpush1.bf16.xpose.msra.mxu0 0
  %601 = vmatprep.subr.bf16.mxu0 0
  %602 = vmatpush1.bf16.xpose.msra.mxu0 0
  %603 = vmatprep.subr.bf16.mxu0 0
  %604 = vmatpush1.bf16.xpose.msra.mxu0 0
  %605 = vmatprep.subr.bf16.mxu0 0
  %606 = vmatpush1.bf16.xpose.msra.mxu0 0
  %607 = vmatprep.subr.bf16.mxu0 0
  %608 = vmatpush1.bf16.xpose.msra.mxu0 0
  %609 = vmatprep.subr.bf16.mxu0 0
  %610 = vmatpush1.bf16.xpose.msra.mxu0 0
  %611 = vmatprep.mubr.bf16.mxu0 0
  %612 = vmatmul.mubr.bf16.gmra.mrb[0].mxu0 %v574
  %v613 = vpop.f32.mrb[0].mxu0
  %v614 = vadd.f32 0.0, %v613
  %v615 = vpop.f32.mrb[0].mxu0
  %v616 = vpop.f32.mrb[0].mxu0
  %v617 = vadd.f32 0.0, %v616
  %v618 = vpop.f32.mrb[0].mxu0
  %619 = vdwg.mxu0
  %vm620 = vcmask 130048
  %v621 = vsel %vm620, %v567, -inf
  %622 = vmax.xlane.f32.xlu0 %v621
  %v623 = vpop.xlane.xlu0 %622
  %v624 = vsel %vm620, %v570, -inf
  %625 = vmax.xlane.f32.xlu0 %v624
  %v626 = vpop.xlane.xlu0 %625
  %v627 = vsel %vm620, %v614, -inf
  %628 = vmax.xlane.f32.xlu0 %v627
  %v629 = vpop.xlane.xlu0 %628
  %v630 = vsel %vm620, %v617, -inf
  %631 = vmax.xlane.f32.xlu0 %v630
  %v632 = vpop.xlane.xlu0 %631
  %v633 = vsub.f32 %v567, %v623
  %v634 = vsub.f32 %v570, %v626
  %v635 = vsub.f32 %v614, %v629
  %v636 = vsub.f32 %v617, %v632
  %v637 = vmul.f32 %v633, 1.442695
  %v638 = vpow.pop %v637
  %v639 = vmul.f32 %v634, 1.442695
  %v640 = vpow.pop %v639
  %v641 = vmul.f32 %v635, 1.442695
  %v642 = vpow.pop %v641
  %v643 = vmul.f32 %v636, 1.442695
  %v644 = vpow.pop %v643
  %v645 = vsel %vm620, %v638, 0.0
  %646 = vadd.xlane.f32.xlu0 %v645
  %v647 = vpop.xlane.xlu0 %646
  %v648 = vsel %vm620, %v640, 0.0
  %649 = vadd.xlane.f32.xlu0 %v648
  %v650 = vpop.xlane.xlu0 %649
  %v651 = vsel %vm620, %v642, 0.0
  %652 = vadd.xlane.f32.xlu0 %v651
  %v653 = vpop.xlane.xlu0 %652
  %v654 = vsel %vm620, %v644, 0.0
  %655 = vadd.xlane.f32.xlu0 %v654
  %v656 = vpop.xlane.xlu0 %655
  %v657 = vrcp.pop %v647
  %v658 = vrcp.pop %v650
  %v659 = vrcp.pop %v653
  %v660 = vrcp.pop %v656
  %v661 = vmul.f32 %v638, %v657
  %v662 = vmul.f32 %v640, %v658
  %v663 = vmul.f32 %v642, %v659
  %v664 = vmul.f32 %v644, %v660
  %v665 = vpack.c.bf16 %v662, %v661
  %v666 = vpack.c.bf16 %v664, %v663
  %v667 = vpack.c.bf16 %v139, %v136
  %v668 = vpack.c.bf16 %v147, %v144
  %v670 = vsel %vm620, %v665, 0
  %672 = vmatprep.subr.bf16.mxu0 0
  %673 = vmatpush1.bf16.msra.mxu0 %v667
  %674 = vmatprep.subr.bf16.mxu0 0
  %675 = vmatpush1.bf16.msra.mxu0 0
  %676 = vmatprep.subr.bf16.mxu0 0
  %677 = vmatpush1.bf16.msra.mxu0 0
  %678 = vmatprep.subr.bf16.mxu0 0
  %679 = vmatpush1.bf16.msra.mxu0 0
  %680 = vmatprep.subr.bf16.mxu0 0
  %681 = vmatpush1.bf16.msra.mxu0 0
  %682 = vmatprep.subr.bf16.mxu0 0
  %683 = vmatpush1.bf16.msra.mxu0 0
  %684 = vmatprep.subr.bf16.mxu0 0
  %685 = vmatpush1.bf16.msra.mxu0 0
  %686 = vmatprep.subr.bf16.mxu0 0
  %687 = vmatpush1.bf16.msra.mxu0 0
  %688 = vmatprep.subr.bf16.mxu0 0
  %689 = vmatpush1.bf16.msra.mxu0 0
  %690 = vmatprep.subr.bf16.mxu0 0
  %691 = vmatpush1.bf16.msra.mxu0 0
  %692 = vmatprep.subr.bf16.mxu0 0
  %693 = vmatpush1.bf16.msra.mxu0 0
  %694 = vmatprep.subr.bf16.mxu0 0
  %695 = vmatpush1.bf16.msra.mxu0 0
  %696 = vmatprep.subr.bf16.mxu0 0
  %697 = vmatpush1.bf16.msra.mxu0 0
  %698 = vmatprep.subr.bf16.mxu0 0
  %699 = vmatpush1.bf16.msra.mxu0 0
  %700 = vmatprep.subr.bf16.mxu0 0
  %701 = vmatpush1.bf16.msra.mxu0 0
  %702 = vmatprep.subr.bf16.mxu0 0
  %703 = vmatpush1.bf16.msra.mxu0 0
  %704 = vmatprep.mubr.bf16.mxu0 0
  %705 = vmatmul.mubr.bf16.gmra.mrb[0].mxu0 %v670
  %v706 = vpop.f32.mrb[0].mxu0
  %v707 = vadd.f32 0.0, %v706
  %v708 = vpop.f32.mrb[0].mxu0
  %v709 = vpop.f32.mrb[0].mxu0
  %v710 = vadd.f32 0.0, %v709
  %v711 = vpop.f32.mrb[0].mxu0
  %712 = vdwg.mxu0
  %v714 = vsel %vm620, %v666, 0
  %716 = vmatprep.subr.bf16.mxu0 0
  %717 = vmatpush1.bf16.msra.mxu0 %v668
  %718 = vmatprep.subr.bf16.mxu0 0
  %719 = vmatpush1.bf16.msra.mxu0 0
  %720 = vmatprep.subr.bf16.mxu0 0
  %721 = vmatpush1.bf16.msra.mxu0 0
  %722 = vmatprep.subr.bf16.mxu0 0
  %723 = vmatpush1.bf16.msra.mxu0 0
  %724 = vmatprep.subr.bf16.mxu0 0
  %725 = vmatpush1.bf16.msra.mxu0 0
  %726 = vmatprep.subr.bf16.mxu0 0
  %727 = vmatpush1.bf16.msra.mxu0 0
  %728 = vmatprep.subr.bf16.mxu0 0
  %729 = vmatpush1.bf16.msra.mxu0 0
  %730 = vmatprep.subr.bf16.mxu0 0
  %731 = vmatpush1.bf16.msra.mxu0 0
  %732 = vmatprep.subr.bf16.mxu0 0
  %733 = vmatpush1.bf16.msra.mxu0 0
  %734 = vmatprep.subr.bf16.mxu0 0
  %735 = vmatpush1.bf16.msra.mxu0 0
  %736 = vmatprep.subr.bf16.mxu0 0
  %737 = vmatpush1.bf16.msra.mxu0 0
  %738 = vmatprep.subr.bf16.mxu0 0
  %739 = vmatpush1.bf16.msra.mxu0 0
  %740 = vmatprep.subr.bf16.mxu0 0
  %741 = vmatpush1.bf16.msra.mxu0 0
  %742 = vmatprep.subr.bf16.mxu0 0
  %743 = vmatpush1.bf16.msra.mxu0 0
  %744 = vmatprep.subr.bf16.mxu0 0
  %745 = vmatpush1.bf16.msra.mxu0 0
  %746 = vmatprep.subr.bf16.mxu0 0
  %747 = vmatpush1.bf16.msra.mxu0 0
  %748 = vmatprep.mubr.bf16.mxu0 0
  %749 = vmatmul.mubr.bf16.gmra.mrb[0].mxu0 %v714
  %v750 = vpop.f32.mrb[0].mxu0
  %v751 = vadd.f32 0.0, %v750
  %v752 = vpop.f32.mrb[0].mxu0
  %v753 = vpop.f32.mrb[0].mxu0
  %v754 = vadd.f32 0.0, %v753
  %v755 = vpop.f32.mrb[0].mxu0
  %756 = vdwg.mxu0
  %v757 = vmul.f32 %v346, %v346
  %v758 = vmul.f32 %v349, %v349
  %v759 = vmul.f32 %v354, %v354
  %v760 = vmul.f32 %v357, %v357
  %v761 = vsel %vm94, %v757, 0.0
  %762 = vadd.xlane.f32.xlu0 %v761
  %v763 = vpop.xlane.xlu0 %762
  %v764 = vsel %vm94, %v758, 0.0
  %765 = vadd.xlane.f32.xlu0 %v764
  %v766 = vpop.xlane.xlu0 %765
  %v767 = vsel %vm94, %v759, 0.0
  %768 = vadd.xlane.f32.xlu0 %v767
  %v769 = vpop.xlane.xlu0 %768
  %v770 = vsel %vm94, %v760, 0.0
  %771 = vadd.xlane.f32.xlu0 %v770
  %v772 = vpop.xlane.xlu0 %771
  %v773 = vmax.f32 %v763, 1e-24
  %v774 = vmax.f32 %v766, 1e-24
  %v775 = vmax.f32 %v769, 1e-24
  %v776 = vmax.f32 %v772, 1e-24
  %v777 = vrsqrt.pop %v773
  %v778 = vrsqrt.pop %v774
  %v779 = vrsqrt.pop %v775
  %v780 = vrsqrt.pop %v776
  %v781 = vmul.f32 %v346, %v777
  %v782 = vmul.f32 %v349, %v778
  %v783 = vmul.f32 %v354, %v779
  %v784 = vmul.f32 %v357, %v780
  %v785 = vmul.f32 %v452, %v452
  %v786 = vmul.f32 %v455, %v455
  %v787 = vmul.f32 %v460, %v460
  %v788 = vmul.f32 %v463, %v463
  %v789 = vsel %vm94, %v785, 0.0
  %790 = vadd.xlane.f32.xlu0 %v789
  %v791 = vpop.xlane.xlu0 %790
  %v792 = vsel %vm94, %v786, 0.0
  %793 = vadd.xlane.f32.xlu0 %v792
  %v794 = vpop.xlane.xlu0 %793
  %v795 = vsel %vm94, %v787, 0.0
  %796 = vadd.xlane.f32.xlu0 %v795
  %v797 = vpop.xlane.xlu0 %796
  %v798 = vsel %vm94, %v788, 0.0
  %799 = vadd.xlane.f32.xlu0 %v798
  %v800 = vpop.xlane.xlu0 %799
  %v801 = vmax.f32 %v791, 1e-24
  %v802 = vmax.f32 %v794, 1e-24
  %v803 = vmax.f32 %v797, 1e-24
  %v804 = vmax.f32 %v800, 1e-24
  %v805 = vrsqrt.pop %v801
  %v806 = vrsqrt.pop %v802
  %v807 = vrsqrt.pop %v803
  %v808 = vrsqrt.pop %v804
  %v809 = vmul.f32 %v452, %v805
  %v810 = vmul.f32 %v455, %v806
  %v811 = vmul.f32 %v460, %v807
  %v812 = vmul.f32 %v463, %v808
  %v813 = vpack.c.bf16 %v782, %v781
  %v814 = vpack.c.bf16 %v784, %v783
  %v815 = vpack.c.bf16 %v810, %v809
  %v816 = vpack.c.bf16 %v812, %v811
  %v818 = vsel %vm94, %v813, 0
  %v821 = vsel %vm94, %v815, 0
  %823 = vmatprep.subr.bf16.mxu0 0
  %824 = vmatpush1.bf16.xpose.msra.mxu0 %v821
  %825 = vmatprep.subr.bf16.mxu0 0
  %826 = vmatpush1.bf16.xpose.msra.mxu0 0
  %827 = vmatprep.subr.bf16.mxu0 0
  %828 = vmatpush1.bf16.xpose.msra.mxu0 0
  %829 = vmatprep.subr.bf16.mxu0 0
  %830 = vmatpush1.bf16.xpose.msra.mxu0 0
  %831 = vmatprep.subr.bf16.mxu0 0
  %832 = vmatpush1.bf16.xpose.msra.mxu0 0
  %833 = vmatprep.subr.bf16.mxu0 0
  %834 = vmatpush1.bf16.xpose.msra.mxu0 0
  %835 = vmatprep.subr.bf16.mxu0 0
  %836 = vmatpush1.bf16.xpose.msra.mxu0 0
  %837 = vmatprep.subr.bf16.mxu0 0
  %838 = vmatpush1.bf16.xpose.msra.mxu0 0
  %839 = vmatprep.subr.bf16.mxu0 0
  %840 = vmatpush1.bf16.xpose.msra.mxu0 0
  %841 = vmatprep.subr.bf16.mxu0 0
  %842 = vmatpush1.bf16.xpose.msra.mxu0 0
  %843 = vmatprep.subr.bf16.mxu0 0
  %844 = vmatpush1.bf16.xpose.msra.mxu0 0
  %845 = vmatprep.subr.bf16.mxu0 0
  %846 = vmatpush1.bf16.xpose.msra.mxu0 0
  %847 = vmatprep.subr.bf16.mxu0 0
  %848 = vmatpush1.bf16.xpose.msra.mxu0 0
  %849 = vmatprep.subr.bf16.mxu0 0
  %850 = vmatpush1.bf16.xpose.msra.mxu0 0
  %851 = vmatprep.subr.bf16.mxu0 0
  %852 = vmatpush1.bf16.xpose.msra.mxu0 0
  %853 = vmatprep.subr.bf16.mxu0 0
  %854 = vmatpush1.bf16.xpose.msra.mxu0 0
  %855 = vmatprep.mubr.bf16.mxu0 0
  %856 = vmatmul.mubr.bf16.gmra.mrb[0].mxu0 %v818
  %v857 = vpop.f32.mrb[0].mxu0
  %v858 = vadd.f32 0.0, %v857
  %v859 = vpop.f32.mrb[0].mxu0
  %v860 = vpop.f32.mrb[0].mxu0
  %v861 = vadd.f32 0.0, %v860
  %v862 = vpop.f32.mrb[0].mxu0
  %863 = vdwg.mxu0
  %v865 = vsel %vm94, %v814, 0
  %v868 = vsel %vm94, %v816, 0
  %870 = vmatprep.subr.bf16.mxu0 0
  %871 = vmatpush1.bf16.xpose.msra.mxu0 %v868
  %872 = vmatprep.subr.bf16.mxu0 0
  %873 = vmatpush1.bf16.xpose.msra.mxu0 0
  %874 = vmatprep.subr.bf16.mxu0 0
  %875 = vmatpush1.bf16.xpose.msra.mxu0 0
  %876 = vmatprep.subr.bf16.mxu0 0
  %877 = vmatpush1.bf16.xpose.msra.mxu0 0
  %878 = vmatprep.subr.bf16.mxu0 0
  %879 = vmatpush1.bf16.xpose.msra.mxu0 0
  %880 = vmatprep.subr.bf16.mxu0 0
  %881 = vmatpush1.bf16.xpose.msra.mxu0 0
  %882 = vmatprep.subr.bf16.mxu0 0
  %883 = vmatpush1.bf16.xpose.msra.mxu0 0
  %884 = vmatprep.subr.bf16.mxu0 0
  %885 = vmatpush1.bf16.xpose.msra.mxu0 0
  %886 = vmatprep.subr.bf16.mxu0 0
  %887 = vmatpush1.bf16.xpose.msra.mxu0 0
  %888 = vmatprep.subr.bf16.mxu0 0
  %889 = vmatpush1.bf16.xpose.msra.mxu0 0
  %890 = vmatprep.subr.bf16.mxu0 0
  %891 = vmatpush1.bf16.xpose.msra.mxu0 0
  %892 = vmatprep.subr.bf16.mxu0 0
  %893 = vmatpush1.bf16.xpose.msra.mxu0 0
  %894 = vmatprep.subr.bf16.mxu0 0
  %895 = vmatpush1.bf16.xpose.msra.mxu0 0
  %896 = vmatprep.subr.bf16.mxu0 0
  %897 = vmatpush1.bf16.xpose.msra.mxu0 0
  %898 = vmatprep.subr.bf16.mxu0 0
  %899 = vmatpush1.bf16.xpose.msra.mxu0 0
  %900 = vmatprep.subr.bf16.mxu0 0
  %901 = vmatpush1.bf16.xpose.msra.mxu0 0
  %902 = vmatprep.mubr.bf16.mxu0 0
  %903 = vmatmul.mubr.bf16.gmra.mrb[0].mxu0 %v865
  %v904 = vpop.f32.mrb[0].mxu0
  %v905 = vadd.f32 0.0, %v904
  %v906 = vpop.f32.mrb[0].mxu0
  %v907 = vpop.f32.mrb[0].mxu0
  %v908 = vadd.f32 0.0, %v907
  %v909 = vpop.f32.mrb[0].mxu0
  %910 = vdwg.mxu0
  %v911 = vsel %vm620, %v858, -inf
  %912 = vmax.xlane.f32.xlu0 %v911
  %v913 = vpop.xlane.xlu0 %912
  %v914 = vsel %vm620, %v861, -inf
  %915 = vmax.xlane.f32.xlu0 %v914
  %v916 = vpop.xlane.xlu0 %915
  %v917 = vsel %vm620, %v905, -inf
  %918 = vmax.xlane.f32.xlu0 %v917
  %v919 = vpop.xlane.xlu0 %918
  %v920 = vsel %vm620, %v908, -inf
  %921 = vmax.xlane.f32.xlu0 %v920
  %v922 = vpop.xlane.xlu0 %921
  %v923 = vsub.f32 %v858, %v913
  %v924 = vsub.f32 %v861, %v916
  %v925 = vsub.f32 %v905, %v919
  %v926 = vsub.f32 %v908, %v922
  %v927 = vmul.f32 %v923, 1.442695
  %v928 = vpow.pop %v927
  %v929 = vmul.f32 %v924, 1.442695
  %v930 = vpow.pop %v929
  %v931 = vmul.f32 %v925, 1.442695
  %v932 = vpow.pop %v931
  %v933 = vmul.f32 %v926, 1.442695
  %v934 = vpow.pop %v933
  %v935 = vsel %vm620, %v928, 0.0
  %936 = vadd.xlane.f32.xlu0 %v935
  %v937 = vpop.xlane.xlu0 %936
  %v938 = vsel %vm620, %v930, 0.0
  %939 = vadd.xlane.f32.xlu0 %v938
  %v940 = vpop.xlane.xlu0 %939
  %v941 = vsel %vm620, %v932, 0.0
  %942 = vadd.xlane.f32.xlu0 %v941
  %v943 = vpop.xlane.xlu0 %942
  %v944 = vsel %vm620, %v934, 0.0
  %945 = vadd.xlane.f32.xlu0 %v944
  %v946 = vpop.xlane.xlu0 %945
  %v947 = vrcp.pop %v937
  %v948 = vrcp.pop %v940
  %v949 = vrcp.pop %v943
  %v950 = vrcp.pop %v946
  %v951 = vmul.f32 %v928, %v947
  %v952 = vmul.f32 %v930, %v948
  %v953 = vmul.f32 %v932, %v949
  %v954 = vmul.f32 %v934, %v950
  %v955 = vld [vmem:[%s4] sm:$0xf]
  %v956 = vld [vmem:[%s4 + $0x4] sm:$0xf]
  %v957 = vld [vmem:[%s4 + $0x8] sm:$0xf]
  %v958 = vld [vmem:[%s4 + $0xc] sm:$0xf]
  %v959 = vld [vmem:[%s4 + $0x10] sm:$0xf]
  %v960 = vld [vmem:[%s4 + $0x14] sm:$0xf]
  %v961 = vld [vmem:[%s4 + $0x18] sm:$0xf]
  %v962 = vld [vmem:[%s4 + $0x1c] sm:$0xf]
  %v963 = vpack.c.bf16 %v952, %v951
  %v964 = vpack.c.bf16 %v954, %v953
  %v973 = vunpack.c.l.b16 %v955
  %v974 = vunpack.c.l.b16 %v956
  %v975 = vunpack.c.l.b16 %v957
  %v976 = vunpack.c.l.b16 %v958
  %v977 = vunpack.c.l.b16 %v959
  %v978 = vunpack.c.l.b16 %v960
  %v979 = vunpack.c.l.b16 %v961
  %v980 = vunpack.c.l.b16 %v962
  %v981 = vpack.c.b16 %v974, %v973
  %v982 = vpack.c.b16 %v976, %v975
  %v983 = vpack.c.b16 %v978, %v977
  %v984 = vpack.c.b16 %v980, %v979
  %v986 = vsel %vm620, %v981, 0
  %v989 = vsel %vm620, %v982, 0
  %v992 = vsel %vm620, %v983, 0
  %v995 = vsel %vm620, %v984, 0
  %v998 = vsel %vm620, %v963, 0
  %1000 = vmatprep.subr.bf16.mxu0 0
  %1001 = vmatpush1.bf16.xpose.msra.mxu0 %v998
  %1002 = vmatprep.subr.bf16.mxu0 0
  %1003 = vmatpush1.bf16.xpose.msra.mxu0 0
  %1004 = vmatprep.subr.bf16.mxu0 0
  %1005 = vmatpush1.bf16.xpose.msra.mxu0 0
  %1006 = vmatprep.subr.bf16.mxu0 0
  %1007 = vmatpush1.bf16.xpose.msra.mxu0 0
  %1008 = vmatprep.subr.bf16.mxu0 0
  %1009 = vmatpush1.bf16.xpose.msra.mxu0 0
  %1010 = vmatprep.subr.bf16.mxu0 0
  %1011 = vmatpush1.bf16.xpose.msra.mxu0 0
  %1012 = vmatprep.subr.bf16.mxu0 0
  %1013 = vmatpush1.bf16.xpose.msra.mxu0 0
  %1014 = vmatprep.subr.bf16.mxu0 0
  %1015 = vmatpush1.bf16.xpose.msra.mxu0 0
  %1016 = vmatprep.subr.bf16.mxu0 0
  %1017 = vmatpush1.bf16.xpose.msra.mxu0 0
  %1018 = vmatprep.subr.bf16.mxu0 0
  %1019 = vmatpush1.bf16.xpose.msra.mxu0 0
  %1020 = vmatprep.subr.bf16.mxu0 0
  %1021 = vmatpush1.bf16.xpose.msra.mxu0 0
  %1022 = vmatprep.subr.bf16.mxu0 0
  %1023 = vmatpush1.bf16.xpose.msra.mxu0 0
  %1024 = vmatprep.subr.bf16.mxu0 0
  %1025 = vmatpush1.bf16.xpose.msra.mxu0 0
  %1026 = vmatprep.subr.bf16.mxu0 0
  %1027 = vmatpush1.bf16.xpose.msra.mxu0 0
  %1028 = vmatprep.subr.bf16.mxu0 0
  %1029 = vmatpush1.bf16.xpose.msra.mxu0 0
  %1030 = vmatprep.subr.bf16.mxu0 0
  %1031 = vmatpush1.bf16.xpose.msra.mxu0 0
  %1032 = vmatprep.mubr.bf16.mxu0 0
  %1033 = vmatmul.mubr.bf16.gmra.mrb[0].mxu0 %v986
  %v1034 = vpop.f32.mrb[0].mxu0
  %v1035 = vadd.f32 0.0, %v1034
  %v1036 = vpop.f32.mrb[0].mxu0
  %v1037 = vpop.f32.mrb[0].mxu0
  %v1038 = vadd.f32 0.0, %v1037
  %v1039 = vpop.f32.mrb[0].mxu0
  %1040 = vmatprep.mubr.bf16.mxu0 0
  %1041 = vmatmul.mubr.bf16.gmra.mrb[0].mxu0 %v989
  %v1042 = vpop.f32.mrb[0].mxu0
  %v1043 = vadd.f32 0.0, %v1042
  %v1044 = vpop.f32.mrb[0].mxu0
  %v1045 = vpop.f32.mrb[0].mxu0
  %v1046 = vadd.f32 0.0, %v1045
  %v1047 = vpop.f32.mrb[0].mxu0
  %1048 = vmatprep.mubr.bf16.mxu0 0
  %1049 = vmatmul.mubr.bf16.gmra.mrb[0].mxu0 %v992
  %v1050 = vpop.f32.mrb[0].mxu0
  %v1051 = vadd.f32 0.0, %v1050
  %v1052 = vpop.f32.mrb[0].mxu0
  %v1053 = vpop.f32.mrb[0].mxu0
  %v1054 = vadd.f32 0.0, %v1053
  %v1055 = vpop.f32.mrb[0].mxu0
  %1056 = vmatprep.mubr.bf16.mxu0 0
  %1057 = vmatmul.mubr.bf16.gmra.mrb[0].mxu0 %v995
  %v1058 = vpop.f32.mrb[0].mxu0
  %v1059 = vadd.f32 0.0, %v1058
  %v1060 = vpop.f32.mrb[0].mxu0
  %v1061 = vpop.f32.mrb[0].mxu0
  %v1062 = vadd.f32 0.0, %v1061
  %v1063 = vpop.f32.mrb[0].mxu0
  %1064 = vdwg.mxu0
  %v1066 = vsel %vm620, %v964, 0
  %1068 = vmatprep.subr.bf16.mxu0 0
  %1069 = vmatpush1.bf16.xpose.msra.mxu0 %v1066
  %1070 = vmatprep.subr.bf16.mxu0 0
  %1071 = vmatpush1.bf16.xpose.msra.mxu0 0
  %1072 = vmatprep.subr.bf16.mxu0 0
  %1073 = vmatpush1.bf16.xpose.msra.mxu0 0
  %1074 = vmatprep.subr.bf16.mxu0 0
  %1075 = vmatpush1.bf16.xpose.msra.mxu0 0
  %1076 = vmatprep.subr.bf16.mxu0 0
  %1077 = vmatpush1.bf16.xpose.msra.mxu0 0
  %1078 = vmatprep.subr.bf16.mxu0 0
  %1079 = vmatpush1.bf16.xpose.msra.mxu0 0
  %1080 = vmatprep.subr.bf16.mxu0 0
  %1081 = vmatpush1.bf16.xpose.msra.mxu0 0
  %1082 = vmatprep.subr.bf16.mxu0 0
  %1083 = vmatpush1.bf16.xpose.msra.mxu0 0
  %1084 = vmatprep.subr.bf16.mxu0 0
  %1085 = vmatpush1.bf16.xpose.msra.mxu0 0
  %1086 = vmatprep.subr.bf16.mxu0 0
  %1087 = vmatpush1.bf16.xpose.msra.mxu0 0
  %1088 = vmatprep.subr.bf16.mxu0 0
  %1089 = vmatpush1.bf16.xpose.msra.mxu0 0
  %1090 = vmatprep.subr.bf16.mxu0 0
  %1091 = vmatpush1.bf16.xpose.msra.mxu0 0
  %1092 = vmatprep.subr.bf16.mxu0 0
  %1093 = vmatpush1.bf16.xpose.msra.mxu0 0
  %1094 = vmatprep.subr.bf16.mxu0 0
  %1095 = vmatpush1.bf16.xpose.msra.mxu0 0
  %1096 = vmatprep.subr.bf16.mxu0 0
  %1097 = vmatpush1.bf16.xpose.msra.mxu0 0
  %1098 = vmatprep.subr.bf16.mxu0 0
  %1099 = vmatpush1.bf16.xpose.msra.mxu0 0
  %1100 = vmatprep.mubr.bf16.mxu0 0
  %1101 = vmatmul.mubr.bf16.gmra.mrb[0].mxu0 %v986
  %v1102 = vpop.f32.mrb[0].mxu0
  %v1103 = vadd.f32 0.0, %v1102
  %v1104 = vpop.f32.mrb[0].mxu0
  %v1105 = vpop.f32.mrb[0].mxu0
  %v1106 = vadd.f32 0.0, %v1105
  %v1107 = vpop.f32.mrb[0].mxu0
  %1108 = vmatprep.mubr.bf16.mxu0 0
  %1109 = vmatmul.mubr.bf16.gmra.mrb[0].mxu0 %v989
  %v1110 = vpop.f32.mrb[0].mxu0
  %v1111 = vadd.f32 0.0, %v1110
  %v1112 = vpop.f32.mrb[0].mxu0
  %v1113 = vpop.f32.mrb[0].mxu0
  %v1114 = vadd.f32 0.0, %v1113
  %v1115 = vpop.f32.mrb[0].mxu0
  %1116 = vmatprep.mubr.bf16.mxu0 0
  %1117 = vmatmul.mubr.bf16.gmra.mrb[0].mxu0 %v992
  %v1118 = vpop.f32.mrb[0].mxu0
  %v1119 = vadd.f32 0.0, %v1118
  %v1120 = vpop.f32.mrb[0].mxu0
  %v1121 = vpop.f32.mrb[0].mxu0
  %v1122 = vadd.f32 0.0, %v1121
  %v1123 = vpop.f32.mrb[0].mxu0
  %1124 = vmatprep.mubr.bf16.mxu0 0
  %1125 = vmatmul.mubr.bf16.gmra.mrb[0].mxu0 %v995
  %v1126 = vpop.f32.mrb[0].mxu0
  %v1127 = vadd.f32 0.0, %v1126
  %v1128 = vpop.f32.mrb[0].mxu0
  %v1129 = vpop.f32.mrb[0].mxu0
  %v1130 = vadd.f32 0.0, %v1129
  %v1131 = vpop.f32.mrb[0].mxu0
  %1132 = vdwg.mxu0
  %v1133 = vpack.c.bf16 %v1038, %v1035
  %v1134 = vpack.c.bf16 %v1046, %v1043
  %v1135 = vpack.c.bf16 %v1054, %v1051
  %v1136 = vpack.c.bf16 %v1062, %v1059
  %v1137 = vpack.c.bf16 %v1106, %v1103
  %v1138 = vpack.c.bf16 %v1114, %v1111
  %v1139 = vpack.c.bf16 %v1122, %v1119
  %v1140 = vpack.c.bf16 %v1130, %v1127
  %v1142 = vsel %vm620, %v1133, 0
  %v1145 = vsel %vm620, %v1134, 0
  %v1148 = vsel %vm620, %v1135, 0
  %v1151 = vsel %vm620, %v1136, 0
  %1153 = vmatprep.subr.bf16.mxu0 0
  %1154 = vmatpush1.bf16.xpose.msra.mxu0 %v986
  %1155 = vmatprep.subr.bf16.mxu0 0
  %1156 = vmatpush1.bf16.xpose.msra.mxu0 %v989
  %1157 = vmatprep.subr.bf16.mxu0 0
  %1158 = vmatpush1.bf16.xpose.msra.mxu0 %v992
  %1159 = vmatprep.subr.bf16.mxu0 0
  %1160 = vmatpush1.bf16.xpose.msra.mxu0 %v995
  %1161 = vmatprep.subr.bf16.mxu0 0
  %1162 = vmatpush1.bf16.xpose.msra.mxu0 0
  %1163 = vmatprep.subr.bf16.mxu0 0
  %1164 = vmatpush1.bf16.xpose.msra.mxu0 0
  %1165 = vmatprep.subr.bf16.mxu0 0
  %1166 = vmatpush1.bf16.xpose.msra.mxu0 0
  %1167 = vmatprep.subr.bf16.mxu0 0
  %1168 = vmatpush1.bf16.xpose.msra.mxu0 0
  %1169 = vmatprep.subr.bf16.mxu0 0
  %1170 = vmatpush1.bf16.xpose.msra.mxu0 0
  %1171 = vmatprep.subr.bf16.mxu0 0
  %1172 = vmatpush1.bf16.xpose.msra.mxu0 0
  %1173 = vmatprep.subr.bf16.mxu0 0
  %1174 = vmatpush1.bf16.xpose.msra.mxu0 0
  %1175 = vmatprep.subr.bf16.mxu0 0
  %1176 = vmatpush1.bf16.xpose.msra.mxu0 0
  %1177 = vmatprep.subr.bf16.mxu0 0
  %1178 = vmatpush1.bf16.xpose.msra.mxu0 0
  %1179 = vmatprep.subr.bf16.mxu0 0
  %1180 = vmatpush1.bf16.xpose.msra.mxu0 0
  %1181 = vmatprep.subr.bf16.mxu0 0
  %1182 = vmatpush1.bf16.xpose.msra.mxu0 0
  %1183 = vmatprep.subr.bf16.mxu0 0
  %1184 = vmatpush1.bf16.xpose.msra.mxu0 0
  %1185 = vmatprep.mubr.bf16.mxu0 0
  %1186 = vmatmul.mubr.bf16.gmra.mrb[0].mxu0 %v1142
  %v1187 = vpop.f32.mrb[0].mxu0
  %v1188 = vadd.f32 0.0, %v1187
  %v1189 = vpop.f32.mrb[0].mxu0
  %v1190 = vpop.f32.mrb[0].mxu0
  %v1191 = vadd.f32 0.0, %v1190
  %v1192 = vpop.f32.mrb[0].mxu0
  %1193 = vmatprep.mubr.bf16.mxu0 0
  %1194 = vmatmul.mubr.bf16.gmra.mrb[0].mxu0 %v1145
  %v1195 = vpop.f32.mrb[0].mxu0
  %v1196 = vadd.f32 0.0, %v1195
  %v1197 = vpop.f32.mrb[0].mxu0
  %v1198 = vpop.f32.mrb[0].mxu0
  %v1199 = vadd.f32 0.0, %v1198
  %v1200 = vpop.f32.mrb[0].mxu0
  %1201 = vmatprep.mubr.bf16.mxu0 0
  %1202 = vmatmul.mubr.bf16.gmra.mrb[0].mxu0 %v1148
  %v1203 = vpop.f32.mrb[0].mxu0
  %v1204 = vadd.f32 0.0, %v1203
  %v1205 = vpop.f32.mrb[0].mxu0
  %v1206 = vpop.f32.mrb[0].mxu0
  %v1207 = vadd.f32 0.0, %v1206
  %v1208 = vpop.f32.mrb[0].mxu0
  %1209 = vmatprep.mubr.bf16.mxu0 0
  %1210 = vmatmul.mubr.bf16.gmra.mrb[0].mxu0 %v1151
  %v1211 = vpop.f32.mrb[0].mxu0
  %v1212 = vadd.f32 0.0, %v1211
  %v1213 = vpop.f32.mrb[0].mxu0
  %v1214 = vpop.f32.mrb[0].mxu0
  %v1215 = vadd.f32 0.0, %v1214
  %v1216 = vpop.f32.mrb[0].mxu0
  %1217 = vdwg.mxu0
  %v1219 = vsel %vm620, %v1137, 0
  %v1222 = vsel %vm620, %v1138, 0
  %v1225 = vsel %vm620, %v1139, 0
  %v1228 = vsel %vm620, %v1140, 0
  %1230 = vmatprep.subr.bf16.mxu0 0
  %1231 = vmatpush1.bf16.xpose.msra.mxu0 %v986
  %1232 = vmatprep.subr.bf16.mxu0 0
  %1233 = vmatpush1.bf16.xpose.msra.mxu0 %v989
  %1234 = vmatprep.subr.bf16.mxu0 0
  %1235 = vmatpush1.bf16.xpose.msra.mxu0 %v992
  %1236 = vmatprep.subr.bf16.mxu0 0
  %1237 = vmatpush1.bf16.xpose.msra.mxu0 %v995
  %1238 = vmatprep.subr.bf16.mxu0 0
  %1239 = vmatpush1.bf16.xpose.msra.mxu0 0
  %1240 = vmatprep.subr.bf16.mxu0 0
  %1241 = vmatpush1.bf16.xpose.msra.mxu0 0
  %1242 = vmatprep.subr.bf16.mxu0 0
  %1243 = vmatpush1.bf16.xpose.msra.mxu0 0
  %1244 = vmatprep.subr.bf16.mxu0 0
  %1245 = vmatpush1.bf16.xpose.msra.mxu0 0
  %1246 = vmatprep.subr.bf16.mxu0 0
  %1247 = vmatpush1.bf16.xpose.msra.mxu0 0
  %1248 = vmatprep.subr.bf16.mxu0 0
  %1249 = vmatpush1.bf16.xpose.msra.mxu0 0
  %1250 = vmatprep.subr.bf16.mxu0 0
  %1251 = vmatpush1.bf16.xpose.msra.mxu0 0
  %1252 = vmatprep.subr.bf16.mxu0 0
  %1253 = vmatpush1.bf16.xpose.msra.mxu0 0
  %1254 = vmatprep.subr.bf16.mxu0 0
  %1255 = vmatpush1.bf16.xpose.msra.mxu0 0
  %1256 = vmatprep.subr.bf16.mxu0 0
  %1257 = vmatpush1.bf16.xpose.msra.mxu0 0
  %1258 = vmatprep.subr.bf16.mxu0 0
  %1259 = vmatpush1.bf16.xpose.msra.mxu0 0
  %1260 = vmatprep.subr.bf16.mxu0 0
  %1261 = vmatpush1.bf16.xpose.msra.mxu0 0
  %1262 = vmatprep.mubr.bf16.mxu0 0
  %1263 = vmatmul.mubr.bf16.gmra.mrb[0].mxu0 %v1219
  %v1264 = vpop.f32.mrb[0].mxu0
  %v1265 = vadd.f32 0.0, %v1264
  %v1266 = vpop.f32.mrb[0].mxu0
  %v1267 = vpop.f32.mrb[0].mxu0
  %v1268 = vadd.f32 0.0, %v1267
  %v1269 = vpop.f32.mrb[0].mxu0
  %1270 = vmatprep.mubr.bf16.mxu0 0
  %1271 = vmatmul.mubr.bf16.gmra.mrb[0].mxu0 %v1222
  %v1272 = vpop.f32.mrb[0].mxu0
  %v1273 = vadd.f32 0.0, %v1272
  %v1274 = vpop.f32.mrb[0].mxu0
  %v1275 = vpop.f32.mrb[0].mxu0
  %v1276 = vadd.f32 0.0, %v1275
  %v1277 = vpop.f32.mrb[0].mxu0
  %1278 = vmatprep.mubr.bf16.mxu0 0
  %1279 = vmatmul.mubr.bf16.gmra.mrb[0].mxu0 %v1225
  %v1280 = vpop.f32.mrb[0].mxu0
  %v1281 = vadd.f32 0.0, %v1280
  %v1282 = vpop.f32.mrb[0].mxu0
  %v1283 = vpop.f32.mrb[0].mxu0
  %v1284 = vadd.f32 0.0, %v1283
  %v1285 = vpop.f32.mrb[0].mxu0
  %1286 = vmatprep.mubr.bf16.mxu0 0
  %1287 = vmatmul.mubr.bf16.gmra.mrb[0].mxu0 %v1228
  %v1288 = vpop.f32.mrb[0].mxu0
  %v1289 = vadd.f32 0.0, %v1288
  %v1290 = vpop.f32.mrb[0].mxu0
  %v1291 = vpop.f32.mrb[0].mxu0
  %v1292 = vadd.f32 0.0, %v1291
  %v1293 = vpop.f32.mrb[0].mxu0
  %1294 = vdwg.mxu0
  %s1295 = scalar_lea.vmem %s2, 96
  %v1296 = vld [vmem:[%s1295] sm:$0xf]
  %v1297 = vld [vmem:[%s1295 + $0x4] sm:$0xf]
  %v1298 = vld [vmem:[%s1295 + $0x8] sm:$0xf]
  %v1299 = vld [vmem:[%s1295 + $0xc] sm:$0xf]
  %v1300 = vld [vmem:[%s1295 + $0x10] sm:$0xf]
  %v1301 = vld [vmem:[%s1295 + $0x14] sm:$0xf]
  %v1302 = vld [vmem:[%s1295 + $0x18] sm:$0xf]
  %v1303 = vld [vmem:[%s1295 + $0x1c] sm:$0xf]
  %v1304 = vunpack.c.l.bf16 %v1296
  %v1305 = vunpack.c.l.bf16 %v1297
  %v1306 = vunpack.c.l.bf16 %v1298
  %v1307 = vunpack.c.l.bf16 %v1299
  %v1308 = vunpack.c.l.bf16 %v1300
  %v1309 = vunpack.c.l.bf16 %v1301
  %v1310 = vunpack.c.l.bf16 %v1302
  %v1311 = vunpack.c.l.bf16 %v1303
  %v1312 = vmul.f32 %v1188, %v1304
  %v1313 = vmul.f32 %v1191, %v1305
  %v1314 = vmul.f32 %v1196, %v1306
  %v1315 = vmul.f32 %v1199, %v1307
  %v1316 = vmul.f32 %v1204, %v1308
  %v1317 = vmul.f32 %v1207, %v1309
  %v1318 = vmul.f32 %v1212, %v1310
  %v1319 = vmul.f32 %v1215, %v1311
  %v1320 = vmul.f32 %v1265, %v1304
  %v1321 = vmul.f32 %v1268, %v1305
  %v1322 = vmul.f32 %v1273, %v1306
  %v1323 = vmul.f32 %v1276, %v1307
  %v1324 = vmul.f32 %v1281, %v1308
  %v1325 = vmul.f32 %v1284, %v1309
  %v1326 = vmul.f32 %v1289, %v1310
  %v1327 = vmul.f32 %v1292, %v1311
  %v1328 = vpack.c.bf16 %v245, %v242
  %v1329 = vpack.c.bf16 %v253, %v250
  %v1330 = vpack.c.bf16 %v1313, %v1312
  %v1331 = vpack.c.bf16 %v1315, %v1314
  %v1332 = vpack.c.bf16 %v1317, %v1316
  %v1333 = vpack.c.bf16 %v1319, %v1318
  %v1334 = vpack.c.bf16 %v1321, %v1320
  %v1335 = vpack.c.bf16 %v1323, %v1322
  %v1336 = vpack.c.bf16 %v1325, %v1324
  %v1337 = vpack.c.bf16 %v1327, %v1326
  %v1339 = vsel %vm94, %v1328, 0
  %1341 = vmatprep.subr.bf16.mxu0 0
  %1342 = vmatpush1.bf16.msra.mxu0 %v1330
  %1343 = vmatprep.subr.bf16.mxu0 0
  %1344 = vmatpush1.bf16.msra.mxu0 %v1331
  %1345 = vmatprep.subr.bf16.mxu0 0
  %1346 = vmatpush1.bf16.msra.mxu0 %v1332
  %1347 = vmatprep.subr.bf16.mxu0 0
  %1348 = vmatpush1.bf16.msra.mxu0 %v1333
  %1349 = vmatprep.subr.bf16.mxu0 0
  %1350 = vmatpush1.bf16.msra.mxu0 0
  %1351 = vmatprep.subr.bf16.mxu0 0
  %1352 = vmatpush1.bf16.msra.mxu0 0
  %1353 = vmatprep.subr.bf16.mxu0 0
  %1354 = vmatpush1.bf16.msra.mxu0 0
  %1355 = vmatprep.subr.bf16.mxu0 0
  %1356 = vmatpush1.bf16.msra.mxu0 0
  %1357 = vmatprep.subr.bf16.mxu0 0
  %1358 = vmatpush1.bf16.msra.mxu0 0
  %1359 = vmatprep.subr.bf16.mxu0 0
  %1360 = vmatpush1.bf16.msra.mxu0 0
  %1361 = vmatprep.subr.bf16.mxu0 0
  %1362 = vmatpush1.bf16.msra.mxu0 0
  %1363 = vmatprep.subr.bf16.mxu0 0
  %1364 = vmatpush1.bf16.msra.mxu0 0
  %1365 = vmatprep.subr.bf16.mxu0 0
  %1366 = vmatpush1.bf16.msra.mxu0 0
  %1367 = vmatprep.subr.bf16.mxu0 0
  %1368 = vmatpush1.bf16.msra.mxu0 0
  %1369 = vmatprep.subr.bf16.mxu0 0
  %1370 = vmatpush1.bf16.msra.mxu0 0
  %1371 = vmatprep.subr.bf16.mxu0 0
  %1372 = vmatpush1.bf16.msra.mxu0 0
  %1373 = vmatprep.mubr.bf16.mxu0 0
  %1374 = vmatmul.mubr.bf16.gmra.mrb[0].mxu0 %v1339
  %v1375 = vpop.f32.mrb[0].mxu0
  %v1376 = vadd.f32 0.0, %v1375
  %v1377 = vpop.f32.mrb[0].mxu0
  %v1378 = vpop.f32.mrb[0].mxu0
  %v1379 = vadd.f32 0.0, %v1378
  %v1380 = vpop.f32.mrb[0].mxu0
  %1381 = vdwg.mxu0
  %v1383 = vsel %vm94, %v1329, 0
  %1385 = vmatprep.subr.bf16.mxu0 0
  %1386 = vmatpush1.bf16.msra.mxu0 %v1334
  %1387 = vmatprep.subr.bf16.mxu0 0
  %1388 = vmatpush1.bf16.msra.mxu0 %v1335
  %1389 = vmatprep.subr.bf16.mxu0 0
  %1390 = vmatpush1.bf16.msra.mxu0 %v1336
  %1391 = vmatprep.subr.bf16.mxu0 0
  %1392 = vmatpush1.bf16.msra.mxu0 %v1337
  %1393 = vmatprep.subr.bf16.mxu0 0
  %1394 = vmatpush1.bf16.msra.mxu0 0
  %1395 = vmatprep.subr.bf16.mxu0 0
  %1396 = vmatpush1.bf16.msra.mxu0 0
  %1397 = vmatprep.subr.bf16.mxu0 0
  %1398 = vmatpush1.bf16.msra.mxu0 0
  %1399 = vmatprep.subr.bf16.mxu0 0
  %1400 = vmatpush1.bf16.msra.mxu0 0
  %1401 = vmatprep.subr.bf16.mxu0 0
  %1402 = vmatpush1.bf16.msra.mxu0 0
  %1403 = vmatprep.subr.bf16.mxu0 0
  %1404 = vmatpush1.bf16.msra.mxu0 0
  %1405 = vmatprep.subr.bf16.mxu0 0
  %1406 = vmatpush1.bf16.msra.mxu0 0
  %1407 = vmatprep.subr.bf16.mxu0 0
  %1408 = vmatpush1.bf16.msra.mxu0 0
  %1409 = vmatprep.subr.bf16.mxu0 0
  %1410 = vmatpush1.bf16.msra.mxu0 0
  %1411 = vmatprep.subr.bf16.mxu0 0
  %1412 = vmatpush1.bf16.msra.mxu0 0
  %1413 = vmatprep.subr.bf16.mxu0 0
  %1414 = vmatpush1.bf16.msra.mxu0 0
  %1415 = vmatprep.subr.bf16.mxu0 0
  %1416 = vmatpush1.bf16.msra.mxu0 0
  %1417 = vmatprep.mubr.bf16.mxu0 0
  %1418 = vmatmul.mubr.bf16.gmra.mrb[0].mxu0 %v1383
  %v1419 = vpop.f32.mrb[0].mxu0
  %v1420 = vadd.f32 0.0, %v1419
  %v1421 = vpop.f32.mrb[0].mxu0
  %v1422 = vpop.f32.mrb[0].mxu0
  %v1423 = vadd.f32 0.0, %v1422
  %v1424 = vpop.f32.mrb[0].mxu0
  %1425 = vdwg.mxu0
  %s1426 = scalar_lea.vmem %s2, 64
  %v1427 = vld [vmem:[%s1426] sm:$0xf]
  %v1428 = vld [vmem:[%s1426 + $0x4] sm:$0xf]
  %v1429 = vld [vmem:[%s1426 + $0x8] sm:$0xf]
  %v1430 = vld [vmem:[%s1426 + $0xc] sm:$0xf]
  %v1431 = vld [vmem:[%s1426 + $0x10] sm:$0xf]
  %v1432 = vld [vmem:[%s1426 + $0x14] sm:$0xf]
  %v1433 = vld [vmem:[%s1426 + $0x18] sm:$0xf]
  %v1434 = vld [vmem:[%s1426 + $0x1c] sm:$0xf]
  %v1435 = vpack.c.bf16 %v710, %v707
  %v1436 = vpack.c.bf16 %v754, %v751
  %v1445 = vunpack.c.l.b16 %v1427
  %v1446 = vunpack.c.l.b16 %v1428
  %v1447 = vunpack.c.l.b16 %v1429
  %v1448 = vunpack.c.l.b16 %v1430
  %v1449 = vunpack.c.l.b16 %v1431
  %v1450 = vunpack.c.l.b16 %v1432
  %v1451 = vunpack.c.l.b16 %v1433
  %v1452 = vunpack.c.l.b16 %v1434
  %v1453 = vpack.c.b16 %v1446, %v1445
  %v1454 = vpack.c.b16 %v1448, %v1447
  %v1455 = vpack.c.b16 %v1450, %v1449
  %v1456 = vpack.c.b16 %v1452, %v1451
  %v1462 = vsel %vm94, %v1435, 0
  %v1465 = vsel %vm94, %v1436, 0
  %1467 = vmatprep.subr.bf16.mxu0 0
  %1468 = vmatpush1.bf16.msra.mxu0 %v1453
  %1469 = vmatprep.subr.bf16.mxu0 0
  %1470 = vmatpush1.bf16.msra.mxu0 %v1454
  %1471 = vmatprep.subr.bf16.mxu0 0
  %1472 = vmatpush1.bf16.msra.mxu0 %v1455
  %1473 = vmatprep.subr.bf16.mxu0 0
  %1474 = vmatpush1.bf16.msra.mxu0 %v1456
  %1475 = vmatprep.subr.bf16.mxu0 0
  %1476 = vmatpush1.bf16.msra.mxu0 0
  %1477 = vmatprep.subr.bf16.mxu0 0
  %1478 = vmatpush1.bf16.msra.mxu0 0
  %1479 = vmatprep.subr.bf16.mxu0 0
  %1480 = vmatpush1.bf16.msra.mxu0 0
  %1481 = vmatprep.subr.bf16.mxu0 0
  %1482 = vmatpush1.bf16.msra.mxu0 0
  %1483 = vmatprep.subr.bf16.mxu0 0
  %1484 = vmatpush1.bf16.msra.mxu0 0
  %1485 = vmatprep.subr.bf16.mxu0 0
  %1486 = vmatpush1.bf16.msra.mxu0 0
  %1487 = vmatprep.subr.bf16.mxu0 0
  %1488 = vmatpush1.bf16.msra.mxu0 0
  %1489 = vmatprep.subr.bf16.mxu0 0
  %1490 = vmatpush1.bf16.msra.mxu0 0
  %1491 = vmatprep.subr.bf16.mxu0 0
  %1492 = vmatpush1.bf16.msra.mxu0 0
  %1493 = vmatprep.subr.bf16.mxu0 0
  %1494 = vmatpush1.bf16.msra.mxu0 0
  %1495 = vmatprep.subr.bf16.mxu0 0
  %1496 = vmatpush1.bf16.msra.mxu0 0
  %1497 = vmatprep.subr.bf16.mxu0 0
  %1498 = vmatpush1.bf16.msra.mxu0 0
  %1499 = vmatprep.mubr.bf16.mxu0 0
  %1500 = vmatmul.mubr.bf16.gmra.mrb[0].mxu0 %v1462
  %v1501 = vpop.f32.mrb[0].mxu0
  %v1502 = vadd.f32 %v1376, %v1501
  %v1503 = vpop.f32.mrb[0].mxu0
  %v1504 = vpop.f32.mrb[0].mxu0
  %v1505 = vadd.f32 %v1379, %v1504
  %v1506 = vpop.f32.mrb[0].mxu0
  %1507 = vmatprep.mubr.bf16.mxu0 0
  %1508 = vmatmul.mubr.bf16.gmra.mrb[0].mxu0 %v1465
  %v1509 = vpop.f32.mrb[0].mxu0
  %v1510 = vadd.f32 %v1420, %v1509
  %v1511 = vpop.f32.mrb[0].mxu0
  %v1512 = vpop.f32.mrb[0].mxu0
  %v1513 = vadd.f32 %v1423, %v1512
  %v1514 = vpop.f32.mrb[0].mxu0
  %1515 = vdwg.mxu0
  %s1516 = scalar_lea.vmem %s5, 2
  %v1517 = vld [vmem:[%s1516] sm:$0x1]
  %v1519 = vlaneseq
  %v1520 = vshrl.u32 %v1519, 7
  %v1521 = vsub.s32 0, %v1520
  %v1522 = vrot.slane %v1517, %v1521
  %v1524 = vadd.f32 %v1502, %v1522
  %v1525 = vadd.f32 %v1505, %v1522
  %v1526 = vadd.f32 %v1510, %v1522
  %v1527 = vadd.f32 %v1513, %v1522
  %v1528 = vmul.f32 %v1524, 0.5
  %v1529 = vmul.f32 %v1525, 0.5
  %v1530 = vmul.f32 %v1526, 0.5
  %v1531 = vmul.f32 %v1527, 0.5
  %v1532 = vmul.f32 %v1524, 0.70710677
  %v1533 = vmul.f32 %v1525, 0.70710677
  %v1534 = vmul.f32 %v1526, 0.70710677
  %v1535 = vmul.f32 %v1527, 0.70710677
  %vm1536 = vcmp.ge.f32.partialorder %v1532, 0.0
  %vm1537 = vcmp.ge.f32.partialorder %v1533, 0.0
  %vm1538 = vcmp.ge.f32.partialorder %v1534, 0.0
  %vm1539 = vcmp.ge.f32.partialorder %v1535, 0.0
  %v1540 = vsel %vm1536, 1.0, -1.0
  %v1541 = vsel %vm1537, 1.0, -1.0
  %v1542 = vsel %vm1538, 1.0, -1.0
  %v1543 = vsel %vm1539, 1.0, -1.0
  %v1544 = vmul.f32 %v1532, %v1540
  %v1545 = vmul.f32 %v1533, %v1541
  %v1546 = vmul.f32 %v1534, %v1542
  %v1547 = vmul.f32 %v1535, %v1543
  %v1548 = vmul.f32 %v1544, 0.3275911
  %v1549 = vmul.f32 %v1545, 0.3275911
  %v1550 = vmul.f32 %v1546, 0.3275911
  %v1551 = vmul.f32 %v1547, 0.3275911
  %v1552 = vadd.f32 %v1548, 1.0
  %v1553 = vadd.f32 %v1549, 1.0
  %v1554 = vadd.f32 %v1550, 1.0
  %v1555 = vadd.f32 %v1551, 1.0
  %v1556 = vrcp.pop %v1552
  %v1557 = vmul.f32 1.0, %v1556
  %v1558 = vrcp.pop %v1553
  %v1559 = vmul.f32 1.0, %v1558
  %v1560 = vrcp.pop %v1554
  %v1561 = vmul.f32 1.0, %v1560
  %v1562 = vrcp.pop %v1555
  %v1563 = vmul.f32 1.0, %v1562
  %v1564 = vmul.f32 %v1557, 1.0614054
  %v1565 = vmul.f32 %v1559, 1.0614054
  %v1566 = vmul.f32 %v1561, 1.0614054
  %v1567 = vmul.f32 %v1563, 1.0614054
  %v1568 = vadd.f32 %v1564, -1.4531521
  %v1569 = vadd.f32 %v1565, -1.4531521
  %v1570 = vadd.f32 %v1566, -1.4531521
  %v1571 = vadd.f32 %v1567, -1.4531521
  %v1572 = vmul.f32 %v1557, %v1568
  %v1573 = vmul.f32 %v1559, %v1569
  %v1574 = vmul.f32 %v1561, %v1570
  %v1575 = vmul.f32 %v1563, %v1571
  %v1576 = vadd.f32 %v1572, 1.4214138
  %v1577 = vadd.f32 %v1573, 1.4214138
  %v1578 = vadd.f32 %v1574, 1.4214138
  %v1579 = vadd.f32 %v1575, 1.4214138
  %v1580 = vmul.f32 %v1557, %v1576
  %v1581 = vmul.f32 %v1559, %v1577
  %v1582 = vmul.f32 %v1561, %v1578
  %v1583 = vmul.f32 %v1563, %v1579
  %v1584 = vadd.f32 %v1580, -0.28449672
  %v1585 = vadd.f32 %v1581, -0.28449672
  %v1586 = vadd.f32 %v1582, -0.28449672
  %v1587 = vadd.f32 %v1583, -0.28449672
  %v1588 = vmul.f32 %v1557, %v1584
  %v1589 = vmul.f32 %v1559, %v1585
  %v1590 = vmul.f32 %v1561, %v1586
  %v1591 = vmul.f32 %v1563, %v1587
  %v1592 = vadd.f32 %v1588, 0.2548296
  %v1593 = vadd.f32 %v1589, 0.2548296
  %v1594 = vadd.f32 %v1590, 0.2548296
  %v1595 = vadd.f32 %v1591, 0.2548296
  %v1596 = vmul.f32 %v1557, %v1592
  %v1597 = vmul.f32 %v1559, %v1593
  %v1598 = vmul.f32 %v1561, %v1594
  %v1599 = vmul.f32 %v1563, %v1595
  %v1600 = vmul.f32 %v1544, %v1544
  %v1601 = vmul.f32 %v1545, %v1545
  %v1602 = vmul.f32 %v1546, %v1546
  %v1603 = vmul.f32 %v1547, %v1547
  %v1604 = vsub.f32 0.0, %v1600
  %v1605 = vsub.f32 0.0, %v1601
  %v1606 = vsub.f32 0.0, %v1602
  %v1607 = vsub.f32 0.0, %v1603
  %v1608 = vmul.f32 %v1604, 1.442695
  %v1609 = vpow.pop %v1608
  %v1610 = vmul.f32 %v1605, 1.442695
  %v1611 = vpow.pop %v1610
  %v1612 = vmul.f32 %v1606, 1.442695
  %v1613 = vpow.pop %v1612
  %v1614 = vmul.f32 %v1607, 1.442695
  %v1615 = vpow.pop %v1614
  %v1616 = vmul.f32 %v1596, %v1609
  %v1617 = vmul.f32 %v1597, %v1611
  %v1618 = vmul.f32 %v1598, %v1613
  %v1619 = vmul.f32 %v1599, %v1615
  %v1620 = vsub.f32 1.0, %v1616
  %v1621 = vsub.f32 1.0, %v1617
  %v1622 = vsub.f32 1.0, %v1618
  %v1623 = vsub.f32 1.0, %v1619
  %v1624 = vmul.f32 %v1540, %v1620
  %v1625 = vmul.f32 %v1541, %v1621
  %v1626 = vmul.f32 %v1542, %v1622
  %v1627 = vmul.f32 %v1543, %v1623
  %v1628 = vadd.f32 %v1624, 1.0
  %v1629 = vadd.f32 %v1625, 1.0
  %v1630 = vadd.f32 %v1626, 1.0
  %v1631 = vadd.f32 %v1627, 1.0
  %v1632 = vmul.f32 %v1528, %v1628
  %v1633 = vmul.f32 %v1529, %v1629
  %v1634 = vmul.f32 %v1530, %v1630
  %v1635 = vmul.f32 %v1531, %v1631
  %1636 = vst.msk [vmem:[%s7] sm:$0xff] %vm94, %v1632
  %1637 = vst.msk [vmem:[%s7 + $0x8] sm:$0xff] %vm94, %v1633
  %1638 = vst.msk [vmem:[%s7 + $0x10] sm:$0xff] %vm94, %v1634
  %1639 = vst.msk [vmem:[%s7 + $0x18] sm:$0xff] %vm94, %v1635
  // Predicated region
  $region30: #{_lambda_.1} parent=0 // pred_check
    _
  $region31: #{_lambda_.1} parent=0 // pred_check_branch
    %1641 = sbr.rel (0) target = $region33
  $region32: #{_lambda_.1} parent=0 // pred_region
    _
  $region33: #{_lambda_.1} parent=0 // pred_fallthru
    _
  // Predicated region
  $region34: #{_lambda_.1} parent=0 // pred_check
    _
  $region35: #{_lambda_.1} parent=0 // pred_check_branch
    %1643 = sbr.rel (0) target = $region37
  $region36: #{_lambda_.1} parent=0 // pred_region
    _
  $region37: #{_lambda_.1} parent=0 // pred_fallthru
    _

</llo_original>
